<compile_context>
chip_gen: v7x
topology: tpu7x:2x2x1
jax: 0.10.0
libtpu: 0.0.40
codegen_flags: <defaults>
</compile_context>

<pallas_src>
import jax
import jax.numpy as jnp
from jax.experimental import pallas as pl
from jax.experimental.pallas import tpu as pltpu

# ---- model hyper-parameters (the PyTorch file's module-level constants) ----
FEATURE_SIZE = 32
LSTM_IN = 32
LSTM_HIDDEN = 32          # 4*LSTM_HIDDEN = 128 -> lane-aligned gate matmuls
NUM_CLASSES = 8
DROPOUT_RATE = 0.5        # unused in eval-mode forward
CLASS_AGNO = True         # classifier output dim = 2 if True else NUM_CLASSES

SUBLANE = 8               # fp32 sublane count; batch is padded to this


def _oad_kernel(x_ref, w1_ref, b1_ref, wih_ref, whh_ref, bgate_ref,
                h_all_ref, gx_scr):
    """Whole sequence in one invocation (grid=()).

    x_ref:    (T*Bp, F)     time-major rows (row = t*Bp + b)
    w1_ref:   (F, LSTM_IN)
    b1_ref:   (1, LSTM_IN)
    wih_ref:  (LSTM_IN, 4H)
    whh_ref:  (H, 4H)
    bgate_ref:(1, 4H)       b_ih + b_hh pre-fused
    h_all_ref:(T, Bp, H)    per-step hidden states (output)
    gx_scr:   (T, Bp, 4H)   VMEM scratch for the hoisted x-side gates
    """
    T, Bp, H = h_all_ref.shape

    # ---- time-parallel pre-pass (hoisted off the serial critical path) ----
    # preprocess Linear + ReLU (dropout is identity in eval mode)
    pre = jnp.dot(x_ref[...], w1_ref[...],
                  preferred_element_type=jnp.float32) + b1_ref[...]
    pre = jnp.maximum(pre, 0.0)                                   # (T*Bp, LSTM_IN)
    # x-side gate contribution for ALL steps + fused biases
    gx = jnp.dot(pre, wih_ref[...],
                 preferred_element_type=jnp.float32) + bgate_ref[...]   # (T*Bp, 4H)
    gx_scr[...] = gx.reshape(T, Bp, 4 * H)

    whh = whh_ref[...]                                            # hoisted load

    # ---- serial recurrence: one (Bp,32)x(32,128) matmul + elementwise/step ----
    def step(t, carry):
        h, c = carry
        gates = gx_scr[t] + jnp.dot(h, whh,
                                    preferred_element_type=jnp.float32)  # (Bp, 4H)
        # PyTorch LSTMCell gate order: i, f, g, o
        i_g = jax.nn.sigmoid(gates[:, 0 * H:1 * H])
        f_g = jax.nn.sigmoid(gates[:, 1 * H:2 * H])
        g_g = jnp.tanh(gates[:, 2 * H:3 * H])
        o_g = jax.nn.sigmoid(gates[:, 3 * H:4 * H])
        c_new = f_g * c + i_g * g_g
        h_new = o_g * jnp.tanh(c_new)
        h_all_ref[t] = h_new
        return (h_new, c_new)

    zeros = jnp.zeros((Bp, H), jnp.float32)
    jax.lax.fori_loop(0, T, step, (zeros, zeros), unroll=True)


def prepare_params(params):
    """One-time parameter re-layout (outside the per-call path): transpose
    weights for right-multiplication, fuse the two LSTM biases."""
    return {
        "w1t":     jnp.asarray(params["w1"].T),                       # (F, LSTM_IN)
        "b1":      jnp.asarray(params["b1"][None, :]),                # (1, LSTM_IN)
        "wih_t":   jnp.asarray(params["w_ih"].T),                     # (LSTM_IN, 4H)
        "whh_t":   jnp.asarray(params["w_hh"].T),                     # (H, 4H)
        "b_gates": jnp.asarray((params["b_ih"] + params["b_hh"])[None, :]),  # (1, 4H)
        "wct":     jnp.asarray(params["wc"].T),                       # (H, C)
        "bc":      jnp.asarray(params["bc"][None, :]),                # (1, C)
    }


@jax.jit
def oad_forward(feature_in, kparams):
    """feature_in: (B, T, FEATURE_SIZE) float32. Returns (B*T, C) scores."""
    B, T, F = feature_in.shape
    H = LSTM_HIDDEN
    C = kparams["wct"].shape[1]
    Bp = ((B + SUBLANE - 1) // SUBLANE) * SUBLANE    # pad batch to sublane mult.

    x = feature_in
    if Bp != B:
        x = jnp.pad(x, ((0, Bp - B), (0, 0), (0, 0)))
    # time-major rows: row index = t*Bp + b
    x2d = jnp.transpose(x, (1, 0, 2)).reshape(T * Bp, F)

    vmem = pl.BlockSpec(memory_space=pltpu.MemorySpace.VMEM)
    # TODO(synk): for very long T, chunk the sequence (T-slabs) to respect the
    # v7x 32 MiB scoped-VMEM default; at these sizes everything fits trivially.
    h_all = pl.pallas_call(
        _oad_kernel,
        out_shape=jax.ShapeDtypeStruct((T, Bp, H), jnp.float32),
        in_specs=[vmem] * 6,
        out_specs=vmem,
        scratch_shapes=[pltpu.VMEM((T, Bp, 4 * H), jnp.float32)],
    )(x2d, kparams["w1t"], kparams["b1"], kparams["wih_t"],
      kparams["whh_t"], kparams["b_gates"])

    # classifier hoisted out of the recurrence: one (T*Bp, H) x (H, C) matmul
    # (dropout is identity in eval mode)
    scores = h_all.reshape(T * Bp, H) @ kparams["wct"] + kparams["bc"]   # (T*Bp, C)
    scores = scores.reshape(T, Bp, C)[:, :B]                             # (T, B, C)
    # torch.stack(score_stack, dim=1).view(-1, C)
    return jnp.transpose(scores, (1, 0, 2)).reshape(-1, C)


def _reference_forward(feature_in, params, class_agno=CLASS_AGNO):
    """Pure-JAX reference (lax.scan) for validation."""
    B, T, F = feature_in.shape
    H = LSTM_HIDDEN
    C = 2 if class_agno else NUM_CLASSES

    def step(carry, x_t):
        h, c = carry
        pre = jnp.maximum(x_t @ params["w1"].T + params["b1"], 0.0)
        gates = (pre @ params["w_ih"].T + params["b_ih"]
                 + h @ params["w_hh"].T + params["b_hh"])
        i_g = jax.nn.sigmoid(gates[:, 0 * H:1 * H])
        f_g = jax.nn.sigmoid(gates[:, 1 * H:2 * H])
        g_g = jnp.tanh(gates[:, 2 * H:3 * H])
        o_g = jax.nn.sigmoid(gates[:, 3 * H:4 * H])
        c = f_g * c + i_g * g_g
        h = o_g * jnp.tanh(c)
        score = h @ params["wc"].T + params["bc"]
        return (h, c), score

    h0 = jnp.zeros((B, H), jnp.float32)
    c0 = jnp.zeros((B, H), jnp.float32)
    _, scores = jax.lax.scan(step, (h0, c0), jnp.transpose(feature_in, (1, 0, 2)))
    return jnp.transpose(scores, (1, 0, 2)).reshape(-1, C)


def init_params(key, class_agno=CLASS_AGNO):
    C = 2 if class_agno else NUM_CLASSES
    ks = jax.random.split(key, 8)
    s = 0.1
    return {
        "w1":   s * jax.random.normal(ks[0], (LSTM_IN, FEATURE_SIZE), jnp.float32),
        "b1":   s * jax.random.normal(ks[1], (LSTM_IN,), jnp.float32),
        "w_ih": s * jax.random.normal(ks[2], (4 * LSTM_HIDDEN, LSTM_IN), jnp.float32),
        "w_hh": s * jax.random.normal(ks[3], (4 * LSTM_HIDDEN, LSTM_HIDDEN), jnp.float32),
        "b_ih": s * jax.random.normal(ks[4], (4 * LSTM_HIDDEN,), jnp.float32),
        "b_hh": s * jax.random.normal(ks[5], (4 * LSTM_HIDDEN,), jnp.float32),
        "wc":   s * jax.random.normal(ks[6], (C, LSTM_HIDDEN), jnp.float32),
        "bc":   s * jax.random.normal(ks[7], (C,), jnp.float32),
    }


if __name__ == "__main__":
    key = jax.random.PRNGKey(0)
    k_x, k_p = jax.random.split(key)

    B, T = 4, 8
    feature_in = jax.random.normal(k_x, (B, T, FEATURE_SIZE), jnp.float32)
    params = init_params(k_p, CLASS_AGNO)
    kparams = prepare_params(params)          # one-time weight re-layout

    out = oad_forward(feature_in, kparams)
    out = jax.block_until_ready(out)

    ref = _reference_forward(feature_in, params, class_agno=CLASS_AGNO)
    assert out.shape == (B * T, 2 if CLASS_AGNO else NUM_CLASSES), out.shape
    assert jnp.allclose(out, ref, atol=1e-5, rtol=1e-5), "mismatch vs reference"

    print("KERNEL_OK")
</pallas_src>

<mosaic_0001>
module attributes {stable_mosaic.version = 11 : i64} {
  func.func @_oad_kernel(%arg0: memref<64x32xf32, #tpu.memory_space<vmem>>, %arg1: memref<32x32xf32, #tpu.memory_space<vmem>>, %arg2: memref<1x32xf32, #tpu.memory_space<vmem>>, %arg3: memref<32x128xf32, #tpu.memory_space<vmem>>, %arg4: memref<32x128xf32, #tpu.memory_space<vmem>>, %arg5: memref<1x128xf32, #tpu.memory_space<vmem>>, %arg6: memref<8x8x32xf32, #tpu.memory_space<vmem>>, %arg7: memref<8x8x128xf32, #tpu.memory_space<vmem>>) attributes {dimension_semantics = [], scalar_prefetch = 0 : i64, scratch_operands = 1 : i64, tpu.core_type = #tpu.core_type<tc>} {
    %c0 = arith.constant 0 : index
    %c0_0 = arith.constant 0 : index
    %0 = vector.load %arg0[%c0, %c0_0] : memref<64x32xf32, #tpu.memory_space<vmem>>, vector<64x32xf32>
    %c0_1 = arith.constant 0 : index
    %c0_2 = arith.constant 0 : index
    %1 = vector.load %arg1[%c0_1, %c0_2] : memref<32x32xf32, #tpu.memory_space<vmem>>, vector<32x32xf32>
    %cst = arith.constant dense<0.000000e+00> : vector<64x32xf32>
    %2 = tpu.matmul %0, %1, %cst {dimension_numbers = #tpu.dot_dimension_numbers<[1], [0], [0], [1], [0, 0, 1, 1], [], []>} : vector<64x32xf32>, vector<32x32xf32>, vector<64x32xf32> -> vector<64x32xf32>
    %c0_3 = arith.constant 0 : index
    %c0_4 = arith.constant 0 : index
    %3 = vector.load %arg2[%c0_3, %c0_4] : memref<1x32xf32, #tpu.memory_space<vmem>>, vector<1x32xf32>
    %4 = vector.broadcast %3 : vector<1x32xf32> to vector<64x32xf32>
    %5 = arith.addf %2, %4 : vector<64x32xf32>
    %cst_5 = arith.constant 0.000000e+00 : f32
    %6 = vector.broadcast %cst_5 : f32 to vector<64x32xf32>
    %7 = arith.maximumf %5, %6 : vector<64x32xf32>
    %c0_6 = arith.constant 0 : index
    %c0_7 = arith.constant 0 : index
    %8 = vector.load %arg3[%c0_6, %c0_7] : memref<32x128xf32, #tpu.memory_space<vmem>>, vector<32x128xf32>
    %cst_8 = arith.constant dense<0.000000e+00> : vector<64x128xf32>
    %9 = tpu.matmul %7, %8, %cst_8 {dimension_numbers = #tpu.dot_dimension_numbers<[1], [0], [0], [1], [0, 0, 1, 1], [], []>} : vector<64x32xf32>, vector<32x128xf32>, vector<64x128xf32> -> vector<64x128xf32>
    %c0_9 = arith.constant 0 : index
    %c0_10 = arith.constant 0 : index
    %10 = vector.load %arg5[%c0_9, %c0_10] : memref<1x128xf32, #tpu.memory_space<vmem>>, vector<1x128xf32>
    %11 = vector.broadcast %10 : vector<1x128xf32> to vector<64x128xf32>
    %12 = arith.addf %9, %11 : vector<64x128xf32>
    %13 = vector.shape_cast %12 : vector<64x128xf32> to vector<8x8x128xf32>
    %c0_11 = arith.constant 0 : index
    %c0_12 = arith.constant 0 : index
    %c0_13 = arith.constant 0 : index
    %14 = vector.load %arg7[%c0_11, %c0_12, %c0_13] : memref<8x8x128xf32, #tpu.memory_space<vmem>>, vector<8x8x128xf32>
    tpu.vector_store %arg7[%c0_11, %c0_12, %c0_13], %13 {strides = array<i32>} : memref<8x8x128xf32, #tpu.memory_space<vmem>>, vector<8x8x128xf32>,
    %c0_14 = arith.constant 0 : index
    %c0_15 = arith.constant 0 : index
    %15 = vector.load %arg4[%c0_14, %c0_15] : memref<32x128xf32, #tpu.memory_space<vmem>>, vector<32x128xf32>
    %cst_16 = arith.constant 0.000000e+00 : f32
    %16 = vector.broadcast %cst_16 : f32 to vector<8x32xf32>
    %c0_i32 = arith.constant 0 : i32
    %17 = arith.index_cast %c0_i32 : i32 to index
    %c0_17 = arith.constant 0 : index
    %c0_18 = arith.constant 0 : index
    %18 = vector.load %arg7[%17, %c0_17, %c0_18] : memref<8x8x128xf32, #tpu.memory_space<vmem>>, vector<1x8x128xf32>
    %19 = vector.shape_cast %18 : vector<1x8x128xf32> to vector<8x128xf32>
    %cst_19 = arith.constant dense<0.000000e+00> : vector<8x128xf32>
    %20 = tpu.matmul %16, %15, %cst_19 {dimension_numbers = #tpu.dot_dimension_numbers<[1], [0], [0], [1], [0, 0, 1, 1], [], []>} : vector<8x32xf32>, vector<32x128xf32>, vector<8x128xf32> -> vector<8x128xf32>
    %21 = arith.addf %19, %20 : vector<8x128xf32>
    %22 = vector.extract_strided_slice %21 {offsets = [0, 0], sizes = [8, 32], strides = [1, 1]} : vector<8x128xf32> to vector<8x32xf32>
    %23 = arith.negf %22 : vector<8x32xf32>
    %24 = math.exp %23 : vector<8x32xf32>
    %cst_20 = arith.constant 1.000000e+00 : f32
    %25 = vector.broadcast %cst_20 : f32 to vector<8x32xf32>
    %26 = arith.addf %25, %24 : vector<8x32xf32>
    %27 = arith.divf %25, %26 : vector<8x32xf32>
    %28 = vector.extract_strided_slice %21 {offsets = [0, 32], sizes = [8, 32], strides = [1, 1]} : vector<8x128xf32> to vector<8x32xf32>
    %29 = arith.negf %28 : vector<8x32xf32>
    %30 = math.exp %29 : vector<8x32xf32>
    %cst_21 = arith.constant 1.000000e+00 : f32
    %31 = vector.broadcast %cst_21 : f32 to vector<8x32xf32>
    %32 = arith.addf %31, %30 : vector<8x32xf32>
    %33 = arith.divf %31, %32 : vector<8x32xf32>
    %34 = vector.extract_strided_slice %21 {offsets = [0, 64], sizes = [8, 32], strides = [1, 1]} : vector<8x128xf32> to vector<8x32xf32>
    %35 = math.tanh %34 : vector<8x32xf32>
    %36 = vector.extract_strided_slice %21 {offsets = [0, 96], sizes = [8, 32], strides = [1, 1]} : vector<8x128xf32> to vector<8x32xf32>
    %37 = arith.negf %36 : vector<8x32xf32>
    %38 = math.exp %37 : vector<8x32xf32>
    %cst_22 = arith.constant 1.000000e+00 : f32
    %39 = vector.broadcast %cst_22 : f32 to vector<8x32xf32>
    %40 = arith.addf %39, %38 : vector<8x32xf32>
    %41 = arith.divf %39, %40 : vector<8x32xf32>
    %42 = arith.mulf %33, %16 : vector<8x32xf32>
    %43 = arith.mulf %27, %35 : vector<8x32xf32>
    %44 = arith.addf %42, %43 : vector<8x32xf32>
    %45 = math.tanh %44 : vector<8x32xf32>
    %46 = arith.mulf %41, %45 : vector<8x32xf32>
    %47 = arith.index_cast %c0_i32 : i32 to index
    %c0_23 = arith.constant 0 : index
    %c0_24 = arith.constant 0 : index
    %48 = vector.load %arg6[%47, %c0_23, %c0_24] : memref<8x8x32xf32, #tpu.memory_space<vmem>>, vector<1x8x32xf32>
    %49 = vector.shape_cast %48 : vector<1x8x32xf32> to vector<8x32xf32>
    %50 = vector.shape_cast %46 : vector<8x32xf32> to vector<1x8x32xf32>
    tpu.vector_store %arg6[%47, %c0_23, %c0_24], %50 {strides = array<i32>} : memref<8x8x32xf32, #tpu.memory_space<vmem>>, vector<1x8x32xf32>,
    %c1_i32 = arith.constant 1 : i32
    %51 = arith.index_cast %c1_i32 : i32 to index
    %c0_25 = arith.constant 0 : index
    %c0_26 = arith.constant 0 : index
    %52 = vector.load %arg7[%51, %c0_25, %c0_26] : memref<8x8x128xf32, #tpu.memory_space<vmem>>, vector<1x8x128xf32>
    %53 = vector.shape_cast %52 : vector<1x8x128xf32> to vector<8x128xf32>
    %cst_27 = arith.constant dense<0.000000e+00> : vector<8x128xf32>
    %54 = tpu.matmul %46, %15, %cst_27 {dimension_numbers = #tpu.dot_dimension_numbers<[1], [0], [0], [1], [0, 0, 1, 1], [], []>} : vector<8x32xf32>, vector<32x128xf32>, vector<8x128xf32> -> vector<8x128xf32>
    %55 = arith.addf %53, %54 : vector<8x128xf32>
    %56 = vector.extract_strided_slice %55 {offsets = [0, 0], sizes = [8, 32], strides = [1, 1]} : vector<8x128xf32> to vector<8x32xf32>
    %57 = arith.negf %56 : vector<8x32xf32>
    %58 = math.exp %57 : vector<8x32xf32>
    %cst_28 = arith.constant 1.000000e+00 : f32
    %59 = vector.broadcast %cst_28 : f32 to vector<8x32xf32>
    %60 = arith.addf %59, %58 : vector<8x32xf32>
    %61 = arith.divf %59, %60 : vector<8x32xf32>
    %62 = vector.extract_strided_slice %55 {offsets = [0, 32], sizes = [8, 32], strides = [1, 1]} : vector<8x128xf32> to vector<8x32xf32>
    %63 = arith.negf %62 : vector<8x32xf32>
    %64 = math.exp %63 : vector<8x32xf32>
    %cst_29 = arith.constant 1.000000e+00 : f32
    %65 = vector.broadcast %cst_29 : f32 to vector<8x32xf32>
    %66 = arith.addf %65, %64 : vector<8x32xf32>
    %67 = arith.divf %65, %66 : vector<8x32xf32>
    %68 = vector.extract_strided_slice %55 {offsets = [0, 64], sizes = [8, 32], strides = [1, 1]} : vector<8x128xf32> to vector<8x32xf32>
    %69 = math.tanh %68 : vector<8x32xf32>
    %70 = vector.extract_strided_slice %55 {offsets = [0, 96], sizes = [8, 32], strides = [1, 1]} : vector<8x128xf32> to vector<8x32xf32>
    %71 = arith.negf %70 : vector<8x32xf32>
    %72 = math.exp %71 : vector<8x32xf32>
    %cst_30 = arith.constant 1.000000e+00 : f32
    %73 = vector.broadcast %cst_30 : f32 to vector<8x32xf32>
    %74 = arith.addf %73, %72 : vector<8x32xf32>
    %75 = arith.divf %73, %74 : vector<8x32xf32>
    %76 = arith.mulf %67, %44 : vector<8x32xf32>
    %77 = arith.mulf %61, %69 : vector<8x32xf32>
    %78 = arith.addf %76, %77 : vector<8x32xf32>
    %79 = math.tanh %78 : vector<8x32xf32>
    %80 = arith.mulf %75, %79 : vector<8x32xf32>
    %81 = arith.index_cast %c1_i32 : i32 to index
    %c0_31 = arith.constant 0 : index
    %c0_32 = arith.constant 0 : index
    %82 = vector.load %arg6[%81, %c0_31, %c0_32] : memref<8x8x32xf32, #tpu.memory_space<vmem>>, vector<1x8x32xf32>
    %83 = vector.shape_cast %82 : vector<1x8x32xf32> to vector<8x32xf32>
    %84 = vector.shape_cast %80 : vector<8x32xf32> to vector<1x8x32xf32>
    tpu.vector_store %arg6[%81, %c0_31, %c0_32], %84 {strides = array<i32>} : memref<8x8x32xf32, #tpu.memory_space<vmem>>, vector<1x8x32xf32>,
    %c2_i32 = arith.constant 2 : i32
    %85 = arith.index_cast %c2_i32 : i32 to index
    %c0_33 = arith.constant 0 : index
    %c0_34 = arith.constant 0 : index
    %86 = vector.load %arg7[%85, %c0_33, %c0_34] : memref<8x8x128xf32, #tpu.memory_space<vmem>>, vector<1x8x128xf32>
    %87 = vector.shape_cast %86 : vector<1x8x128xf32> to vector<8x128xf32>
    %cst_35 = arith.constant dense<0.000000e+00> : vector<8x128xf32>
    %88 = tpu.matmul %80, %15, %cst_35 {dimension_numbers = #tpu.dot_dimension_numbers<[1], [0], [0], [1], [0, 0, 1, 1], [], []>} : vector<8x32xf32>, vector<32x128xf32>, vector<8x128xf32> -> vector<8x128xf32>
    %89 = arith.addf %87, %88 : vector<8x128xf32>
    %90 = vector.extract_strided_slice %89 {offsets = [0, 0], sizes = [8, 32], strides = [1, 1]} : vector<8x128xf32> to vector<8x32xf32>
    %91 = arith.negf %90 : vector<8x32xf32>
    %92 = math.exp %91 : vector<8x32xf32>
    %cst_36 = arith.constant 1.000000e+00 : f32
    %93 = vector.broadcast %cst_36 : f32 to vector<8x32xf32>
    %94 = arith.addf %93, %92 : vector<8x32xf32>
    %95 = arith.divf %93, %94 : vector<8x32xf32>
    %96 = vector.extract_strided_slice %89 {offsets = [0, 32], sizes = [8, 32], strides = [1, 1]} : vector<8x128xf32> to vector<8x32xf32>
    %97 = arith.negf %96 : vector<8x32xf32>
    %98 = math.exp %97 : vector<8x32xf32>
    %cst_37 = arith.constant 1.000000e+00 : f32
    %99 = vector.broadcast %cst_37 : f32 to vector<8x32xf32>
    %100 = arith.addf %99, %98 : vector<8x32xf32>
    %101 = arith.divf %99, %100 : vector<8x32xf32>
    %102 = vector.extract_strided_slice %89 {offsets = [0, 64], sizes = [8, 32], strides = [1, 1]} : vector<8x128xf32> to vector<8x32xf32>
    %103 = math.tanh %102 : vector<8x32xf32>
    %104 = vector.extract_strided_slice %89 {offsets = [0, 96], sizes = [8, 32], strides = [1, 1]} : vector<8x128xf32> to vector<8x32xf32>
    %105 = arith.negf %104 : vector<8x32xf32>
    %106 = math.exp %105 : vector<8x32xf32>
    %cst_38 = arith.constant 1.000000e+00 : f32
    %107 = vector.broadcast %cst_38 : f32 to vector<8x32xf32>
    %108 = arith.addf %107, %106 : vector<8x32xf32>
    %109 = arith.divf %107, %108 : vector<8x32xf32>
    %110 = arith.mulf %101, %78 : vector<8x32xf32>
    %111 = arith.mulf %95, %103 : vector<8x32xf32>
    %112 = arith.addf %110, %111 : vector<8x32xf32>
    %113 = math.tanh %112 : vector<8x32xf32>
    %114 = arith.mulf %109, %113 : vector<8x32xf32>
    %115 = arith.index_cast %c2_i32 : i32 to index
    %c0_39 = arith.constant 0 : index
    %c0_40 = arith.constant 0 : index
    %116 = vector.load %arg6[%115, %c0_39, %c0_40] : memref<8x8x32xf32, #tpu.memory_space<vmem>>, vector<1x8x32xf32>
    %117 = vector.shape_cast %116 : vector<1x8x32xf32> to vector<8x32xf32>
    %118 = vector.shape_cast %114 : vector<8x32xf32> to vector<1x8x32xf32>
    tpu.vector_store %arg6[%115, %c0_39, %c0_40], %118 {strides = array<i32>} : memref<8x8x32xf32, #tpu.memory_space<vmem>>, vector<1x8x32xf32>,
    %c3_i32 = arith.constant 3 : i32
    %119 = arith.index_cast %c3_i32 : i32 to index
    %c0_41 = arith.constant 0 : index
    %c0_42 = arith.constant 0 : index
    %120 = vector.load %arg7[%119, %c0_41, %c0_42] : memref<8x8x128xf32, #tpu.memory_space<vmem>>, vector<1x8x128xf32>
    %121 = vector.shape_cast %120 : vector<1x8x128xf32> to vector<8x128xf32>
    %cst_43 = arith.constant dense<0.000000e+00> : vector<8x128xf32>
    %122 = tpu.matmul %114, %15, %cst_43 {dimension_numbers = #tpu.dot_dimension_numbers<[1], [0], [0], [1], [0, 0, 1, 1], [], []>} : vector<8x32xf32>, vector<32x128xf32>, vector<8x128xf32> -> vector<8x128xf32>
    %123 = arith.addf %121, %122 : vector<8x128xf32>
    %124 = vector.extract_strided_slice %123 {offsets = [0, 0], sizes = [8, 32], strides = [1, 1]} : vector<8x128xf32> to vector<8x32xf32>
    %125 = arith.negf %124 : vector<8x32xf32>
    %126 = math.exp %125 : vector<8x32xf32>
    %cst_44 = arith.constant 1.000000e+00 : f32
    %127 = vector.broadcast %cst_44 : f32 to vector<8x32xf32>
    %128 = arith.addf %127, %126 : vector<8x32xf32>
    %129 = arith.divf %127, %128 : vector<8x32xf32>
    %130 = vector.extract_strided_slice %123 {offsets = [0, 32], sizes = [8, 32], strides = [1, 1]} : vector<8x128xf32> to vector<8x32xf32>
    %131 = arith.negf %130 : vector<8x32xf32>
    %132 = math.exp %131 : vector<8x32xf32>
    %cst_45 = arith.constant 1.000000e+00 : f32
    %133 = vector.broadcast %cst_45 : f32 to vector<8x32xf32>
    %134 = arith.addf %133, %132 : vector<8x32xf32>
    %135 = arith.divf %133, %134 : vector<8x32xf32>
    %136 = vector.extract_strided_slice %123 {offsets = [0, 64], sizes = [8, 32], strides = [1, 1]} : vector<8x128xf32> to vector<8x32xf32>
    %137 = math.tanh %136 : vector<8x32xf32>
    %138 = vector.extract_strided_slice %123 {offsets = [0, 96], sizes = [8, 32], strides = [1, 1]} : vector<8x128xf32> to vector<8x32xf32>
    %139 = arith.negf %138 : vector<8x32xf32>
    %140 = math.exp %139 : vector<8x32xf32>
    %cst_46 = arith.constant 1.000000e+00 : f32
    %141 = vector.broadcast %cst_46 : f32 to vector<8x32xf32>
    %142 = arith.addf %141, %140 : vector<8x32xf32>
    %143 = arith.divf %141, %142 : vector<8x32xf32>
    %144 = arith.mulf %135, %112 : vector<8x32xf32>
    %145 = arith.mulf %129, %137 : vector<8x32xf32>
    %146 = arith.addf %144, %145 : vector<8x32xf32>
    %147 = math.tanh %146 : vector<8x32xf32>
    %148 = arith.mulf %143, %147 : vector<8x32xf32>
    %149 = arith.index_cast %c3_i32 : i32 to index
    %c0_47 = arith.constant 0 : index
    %c0_48 = arith.constant 0 : index
    %150 = vector.load %arg6[%149, %c0_47, %c0_48] : memref<8x8x32xf32, #tpu.memory_space<vmem>>, vector<1x8x32xf32>
    %151 = vector.shape_cast %150 : vector<1x8x32xf32> to vector<8x32xf32>
    %152 = vector.shape_cast %148 : vector<8x32xf32> to vector<1x8x32xf32>
    tpu.vector_store %arg6[%149, %c0_47, %c0_48], %152 {strides = array<i32>} : memref<8x8x32xf32, #tpu.memory_space<vmem>>, vector<1x8x32xf32>,
    %c4_i32 = arith.constant 4 : i32
    %153 = arith.index_cast %c4_i32 : i32 to index
    %c0_49 = arith.constant 0 : index
    %c0_50 = arith.constant 0 : index
    %154 = vector.load %arg7[%153, %c0_49, %c0_50] : memref<8x8x128xf32, #tpu.memory_space<vmem>>, vector<1x8x128xf32>
    %155 = vector.shape_cast %154 : vector<1x8x128xf32> to vector<8x128xf32>
    %cst_51 = arith.constant dense<0.000000e+00> : vector<8x128xf32>
    %156 = tpu.matmul %148, %15, %cst_51 {dimension_numbers = #tpu.dot_dimension_numbers<[1], [0], [0], [1], [0, 0, 1, 1], [], []>} : vector<8x32xf32>, vector<32x128xf32>, vector<8x128xf32> -> vector<8x128xf32>
    %157 = arith.addf %155, %156 : vector<8x128xf32>
    %158 = vector.extract_strided_slice %157 {offsets = [0, 0], sizes = [8, 32], strides = [1, 1]} : vector<8x128xf32> to vector<8x32xf32>
    %159 = arith.negf %158 : vector<8x32xf32>
    %160 = math.exp %159 : vector<8x32xf32>
    %cst_52 = arith.constant 1.000000e+00 : f32
    %161 = vector.broadcast %cst_52 : f32 to vector<8x32xf32>
    %162 = arith.addf %161, %160 : vector<8x32xf32>
    %163 = arith.divf %161, %162 : vector<8x32xf32>
    %164 = vector.extract_strided_slice %157 {offsets = [0, 32], sizes = [8, 32], strides = [1, 1]} : vector<8x128xf32> to vector<8x32xf32>
    %165 = arith.negf %164 : vector<8x32xf32>
    %166 = math.exp %165 : vector<8x32xf32>
    %cst_53 = arith.constant 1.000000e+00 : f32
    %167 = vector.broadcast %cst_53 : f32 to vector<8x32xf32>
    %168 = arith.addf %167, %166 : vector<8x32xf32>
    %169 = arith.divf %167, %168 : vector<8x32xf32>
    %170 = vector.extract_strided_slice %157 {offsets = [0, 64], sizes = [8, 32], strides = [1, 1]} : vector<8x128xf32> to vector<8x32xf32>
    %171 = math.tanh %170 : vector<8x32xf32>
    %172 = vector.extract_strided_slice %157 {offsets = [0, 96], sizes = [8, 32], strides = [1, 1]} : vector<8x128xf32> to vector<8x32xf32>
    %173 = arith.negf %172 : vector<8x32xf32>
    %174 = math.exp %173 : vector<8x32xf32>
    %cst_54 = arith.constant 1.000000e+00 : f32
    %175 = vector.broadcast %cst_54 : f32 to vector<8x32xf32>
    %176 = arith.addf %175, %174 : vector<8x32xf32>
    %177 = arith.divf %175, %176 : vector<8x32xf32>
    %178 = arith.mulf %169, %146 : vector<8x32xf32>
    %179 = arith.mulf %163, %171 : vector<8x32xf32>
    %180 = arith.addf %178, %179 : vector<8x32xf32>
    %181 = math.tanh %180 : vector<8x32xf32>
    %182 = arith.mulf %177, %181 : vector<8x32xf32>
    %183 = arith.index_cast %c4_i32 : i32 to index
    %c0_55 = arith.constant 0 : index
    %c0_56 = arith.constant 0 : index
    %184 = vector.load %arg6[%183, %c0_55, %c0_56] : memref<8x8x32xf32, #tpu.memory_space<vmem>>, vector<1x8x32xf32>
    %185 = vector.shape_cast %184 : vector<1x8x32xf32> to vector<8x32xf32>
    %186 = vector.shape_cast %182 : vector<8x32xf32> to vector<1x8x32xf32>
    tpu.vector_store %arg6[%183, %c0_55, %c0_56], %186 {strides = array<i32>} : memref<8x8x32xf32, #tpu.memory_space<vmem>>, vector<1x8x32xf32>,
    %c5_i32 = arith.constant 5 : i32
    %187 = arith.index_cast %c5_i32 : i32 to index
    %c0_57 = arith.constant 0 : index
    %c0_58 = arith.constant 0 : index
    %188 = vector.load %arg7[%187, %c0_57, %c0_58] : memref<8x8x128xf32, #tpu.memory_space<vmem>>, vector<1x8x128xf32>
    %189 = vector.shape_cast %188 : vector<1x8x128xf32> to vector<8x128xf32>
    %cst_59 = arith.constant dense<0.000000e+00> : vector<8x128xf32>
    %190 = tpu.matmul %182, %15, %cst_59 {dimension_numbers = #tpu.dot_dimension_numbers<[1], [0], [0], [1], [0, 0, 1, 1], [], []>} : vector<8x32xf32>, vector<32x128xf32>, vector<8x128xf32> -> vector<8x128xf32>
    %191 = arith.addf %189, %190 : vector<8x128xf32>
    %192 = vector.extract_strided_slice %191 {offsets = [0, 0], sizes = [8, 32], strides = [1, 1]} : vector<8x128xf32> to vector<8x32xf32>
    %193 = arith.negf %192 : vector<8x32xf32>
    %194 = math.exp %193 : vector<8x32xf32>
    %cst_60 = arith.constant 1.000000e+00 : f32
    %195 = vector.broadcast %cst_60 : f32 to vector<8x32xf32>
    %196 = arith.addf %195, %194 : vector<8x32xf32>
    %197 = arith.divf %195, %196 : vector<8x32xf32>
    %198 = vector.extract_strided_slice %191 {offsets = [0, 32], sizes = [8, 32], strides = [1, 1]} : vector<8x128xf32> to vector<8x32xf32>
    %199 = arith.negf %198 : vector<8x32xf32>
    %200 = math.exp %199 : vector<8x32xf32>
    %cst_61 = arith.constant 1.000000e+00 : f32
    %201 = vector.broadcast %cst_61 : f32 to vector<8x32xf32>
    %202 = arith.addf %201, %200 : vector<8x32xf32>
    %203 = arith.divf %201, %202 : vector<8x32xf32>
    %204 = vector.extract_strided_slice %191 {offsets = [0, 64], sizes = [8, 32], strides = [1, 1]} : vector<8x128xf32> to vector<8x32xf32>
    %205 = math.tanh %204 : vector<8x32xf32>
    %206 = vector.extract_strided_slice %191 {offsets = [0, 96], sizes = [8, 32], strides = [1, 1]} : vector<8x128xf32> to vector<8x32xf32>
    %207 = arith.negf %206 : vector<8x32xf32>
    %208 = math.exp %207 : vector<8x32xf32>
    %cst_62 = arith.constant 1.000000e+00 : f32
    %209 = vector.broadcast %cst_62 : f32 to vector<8x32xf32>
    %210 = arith.addf %209, %208 : vector<8x32xf32>
    %211 = arith.divf %209, %210 : vector<8x32xf32>
    %212 = arith.mulf %203, %180 : vector<8x32xf32>
    %213 = arith.mulf %197, %205 : vector<8x32xf32>
    %214 = arith.addf %212, %213 : vector<8x32xf32>
    %215 = math.tanh %214 : vector<8x32xf32>
    %216 = arith.mulf %211, %215 : vector<8x32xf32>
    %217 = arith.index_cast %c5_i32 : i32 to index
    %c0_63 = arith.constant 0 : index
    %c0_64 = arith.constant 0 : index
    %218 = vector.load %arg6[%217, %c0_63, %c0_64] : memref<8x8x32xf32, #tpu.memory_space<vmem>>, vector<1x8x32xf32>
    %219 = vector.shape_cast %218 : vector<1x8x32xf32> to vector<8x32xf32>
    %220 = vector.shape_cast %216 : vector<8x32xf32> to vector<1x8x32xf32>
    tpu.vector_store %arg6[%217, %c0_63, %c0_64], %220 {strides = array<i32>} : memref<8x8x32xf32, #tpu.memory_space<vmem>>, vector<1x8x32xf32>,
    %c6_i32 = arith.constant 6 : i32
    %221 = arith.index_cast %c6_i32 : i32 to index
    %c0_65 = arith.constant 0 : index
    %c0_66 = arith.constant 0 : index
    %222 = vector.load %arg7[%221, %c0_65, %c0_66] : memref<8x8x128xf32, #tpu.memory_space<vmem>>, vector<1x8x128xf32>
    %223 = vector.shape_cast %222 : vector<1x8x128xf32> to vector<8x128xf32>
    %cst_67 = arith.constant dense<0.000000e+00> : vector<8x128xf32>
    %224 = tpu.matmul %216, %15, %cst_67 {dimension_numbers = #tpu.dot_dimension_numbers<[1], [0], [0], [1], [0, 0, 1, 1], [], []>} : vector<8x32xf32>, vector<32x128xf32>, vector<8x128xf32> -> vector<8x128xf32>
    %225 = arith.addf %223, %224 : vector<8x128xf32>
    %226 = vector.extract_strided_slice %225 {offsets = [0, 0], sizes = [8, 32], strides = [1, 1]} : vector<8x128xf32> to vector<8x32xf32>
    %227 = arith.negf %226 : vector<8x32xf32>
    %228 = math.exp %227 : vector<8x32xf32>
    %cst_68 = arith.constant 1.000000e+00 : f32
    %229 = vector.broadcast %cst_68 : f32 to vector<8x32xf32>
    %230 = arith.addf %229, %228 : vector<8x32xf32>
    %231 = arith.divf %229, %230 : vector<8x32xf32>
    %232 = vector.extract_strided_slice %225 {offsets = [0, 32], sizes = [8, 32], strides = [1, 1]} : vector<8x128xf32> to vector<8x32xf32>
    %233 = arith.negf %232 : vector<8x32xf32>
    %234 = math.exp %233 : vector<8x32xf32>
    %cst_69 = arith.constant 1.000000e+00 : f32
    %235 = vector.broadcast %cst_69 : f32 to vector<8x32xf32>
    %236 = arith.addf %235, %234 : vector<8x32xf32>
    %237 = arith.divf %235, %236 : vector<8x32xf32>
    %238 = vector.extract_strided_slice %225 {offsets = [0, 64], sizes = [8, 32], strides = [1, 1]} : vector<8x128xf32> to vector<8x32xf32>
    %239 = math.tanh %238 : vector<8x32xf32>
    %240 = vector.extract_strided_slice %225 {offsets = [0, 96], sizes = [8, 32], strides = [1, 1]} : vector<8x128xf32> to vector<8x32xf32>
    %241 = arith.negf %240 : vector<8x32xf32>
    %242 = math.exp %241 : vector<8x32xf32>
    %cst_70 = arith.constant 1.000000e+00 : f32
    %243 = vector.broadcast %cst_70 : f32 to vector<8x32xf32>
    %244 = arith.addf %243, %242 : vector<8x32xf32>
    %245 = arith.divf %243, %244 : vector<8x32xf32>
    %246 = arith.mulf %237, %214 : vector<8x32xf32>
    %247 = arith.mulf %231, %239 : vector<8x32xf32>
    %248 = arith.addf %246, %247 : vector<8x32xf32>
    %249 = math.tanh %248 : vector<8x32xf32>
    %250 = arith.mulf %245, %249 : vector<8x32xf32>
    %251 = arith.index_cast %c6_i32 : i32 to index
    %c0_71 = arith.constant 0 : index
    %c0_72 = arith.constant 0 : index
    %252 = vector.load %arg6[%251, %c0_71, %c0_72] : memref<8x8x32xf32, #tpu.memory_space<vmem>>, vector<1x8x32xf32>
    %253 = vector.shape_cast %252 : vector<1x8x32xf32> to vector<8x32xf32>
    %254 = vector.shape_cast %250 : vector<8x32xf32> to vector<1x8x32xf32>
    tpu.vector_store %arg6[%251, %c0_71, %c0_72], %254 {strides = array<i32>} : memref<8x8x32xf32, #tpu.memory_space<vmem>>, vector<1x8x32xf32>,
    %c7_i32 = arith.constant 7 : i32
    %255 = arith.index_cast %c7_i32 : i32 to index
    %c0_73 = arith.constant 0 : index
    %c0_74 = arith.constant 0 : index
    %256 = vector.load %arg7[%255, %c0_73, %c0_74] : memref<8x8x128xf32, #tpu.memory_space<vmem>>, vector<1x8x128xf32>
    %257 = vector.shape_cast %256 : vector<1x8x128xf32> to vector<8x128xf32>
    %cst_75 = arith.constant dense<0.000000e+00> : vector<8x128xf32>
    %258 = tpu.matmul %250, %15, %cst_75 {dimension_numbers = #tpu.dot_dimension_numbers<[1], [0], [0], [1], [0, 0, 1, 1], [], []>} : vector<8x32xf32>, vector<32x128xf32>, vector<8x128xf32> -> vector<8x128xf32>
    %259 = arith.addf %257, %258 : vector<8x128xf32>
    %260 = vector.extract_strided_slice %259 {offsets = [0, 0], sizes = [8, 32], strides = [1, 1]} : vector<8x128xf32> to vector<8x32xf32>
    %261 = arith.negf %260 : vector<8x32xf32>
    %262 = math.exp %261 : vector<8x32xf32>
    %cst_76 = arith.constant 1.000000e+00 : f32
    %263 = vector.broadcast %cst_76 : f32 to vector<8x32xf32>
    %264 = arith.addf %263, %262 : vector<8x32xf32>
    %265 = arith.divf %263, %264 : vector<8x32xf32>
    %266 = vector.extract_strided_slice %259 {offsets = [0, 32], sizes = [8, 32], strides = [1, 1]} : vector<8x128xf32> to vector<8x32xf32>
    %267 = arith.negf %266 : vector<8x32xf32>
    %268 = math.exp %267 : vector<8x32xf32>
    %cst_77 = arith.constant 1.000000e+00 : f32
    %269 = vector.broadcast %cst_77 : f32 to vector<8x32xf32>
    %270 = arith.addf %269, %268 : vector<8x32xf32>
    %271 = arith.divf %269, %270 : vector<8x32xf32>
    %272 = vector.extract_strided_slice %259 {offsets = [0, 64], sizes = [8, 32], strides = [1, 1]} : vector<8x128xf32> to vector<8x32xf32>
    %273 = math.tanh %272 : vector<8x32xf32>
    %274 = vector.extract_strided_slice %259 {offsets = [0, 96], sizes = [8, 32], strides = [1, 1]} : vector<8x128xf32> to vector<8x32xf32>
    %275 = arith.negf %274 : vector<8x32xf32>
    %276 = math.exp %275 : vector<8x32xf32>
    %cst_78 = arith.constant 1.000000e+00 : f32
    %277 = vector.broadcast %cst_78 : f32 to vector<8x32xf32>
    %278 = arith.addf %277, %276 : vector<8x32xf32>
    %279 = arith.divf %277, %278 : vector<8x32xf32>
    %280 = arith.mulf %271, %248 : vector<8x32xf32>
    %281 = arith.mulf %265, %273 : vector<8x32xf32>
    %282 = arith.addf %280, %281 : vector<8x32xf32>
    %283 = math.tanh %282 : vector<8x32xf32>
    %284 = arith.mulf %279, %283 : vector<8x32xf32>
    %285 = arith.index_cast %c7_i32 : i32 to index
    %c0_79 = arith.constant 0 : index
    %c0_80 = arith.constant 0 : index
    %286 = vector.load %arg6[%285, %c0_79, %c0_80] : memref<8x8x32xf32, #tpu.memory_space<vmem>>, vector<1x8x32xf32>
    %287 = vector.shape_cast %286 : vector<1x8x32xf32> to vector<8x32xf32>
    %288 = vector.shape_cast %284 : vector<8x32xf32> to vector<1x8x32xf32>
    tpu.vector_store %arg6[%285, %c0_79, %c0_80], %288 {strides = array<i32>} : memref<8x8x32xf32, #tpu.memory_space<vmem>>, vector<1x8x32xf32>,
    %c8_i32 = arith.constant 8 : i32
    return
  }
}

</mosaic_0001>

<llo_original>
// kernel: oad_forward.1
$region0: #{oad_forward.1}
  #allocation0 [shape = 'u32[]', space=smem, size = 0x4, offset = 0x4, fixed_abs, tag = 'smem constant byte address 0x4 - core index']
  #allocation1 [shape = 'u32[144,128]{1,0:T(1,128)}', space=vmem, size = 0x12000, scoped, tag = 'internal scratch']
  #allocation2 [shape = 'f32[8,8,128]{2,1,0:T(8,128)}', space=vmem, size = 0x8000, scoped, tag = 'scratch operand']
  %s0 = inlined_call_operand.vmem [shape: f32[64,32], index: 0, kind: input, shape index: {}]
  %s1 = inlined_call_operand.vmem [shape: f32[32,32], index: 1, kind: input, shape index: {}]
  %s2 = inlined_call_operand.vmem [shape: f32[1,32], index: 2, kind: input, shape index: {}]
  %s3 = inlined_call_operand.vmem [shape: f32[32,128], index: 3, kind: input, shape index: {}]
  %s4 = inlined_call_operand.vmem [shape: f32[32,128], index: 4, kind: input, shape index: {}]
  %s5 = inlined_call_operand.vmem [shape: f32[1,128], index: 5, kind: input, shape index: {}]
  %s6 = inlined_call_operand.vmem [shape: f32[8,8,32], index: 6, kind: output, shape index: {}]
  %s7 = sld [smem:[#allocation0]]
  $region34: #{oad_forward.1} parent=0
    _
  %s9 = ssub.s32 1, %s7
  %s10 = scalar_select 0, %s9, %s7
  // Predicated region
  $region2: #{oad_forward.1} parent=0 // pred_check
    _
  $region3: #{oad_forward.1} parent=0 // pred_check_branch
    %12 = sbr.rel (0) target = $region5
  $region4: #{oad_forward.1} parent=0 // pred_region
    _
  $region5: #{oad_forward.1} parent=0 // pred_fallthru
    _
  // Predicated region
  $region6: #{oad_forward.1} parent=0 // pred_check
    _
  $region7: #{oad_forward.1} parent=0 // pred_check_branch
    %14 = sbr.rel (0) target = $region9
  $region8: #{oad_forward.1} parent=0 // pred_region
    _
  $region9: #{oad_forward.1} parent=0 // pred_fallthru
    _
  // Predicated region
  $region10: #{oad_forward.1} parent=0 // pred_check
    _
  $region11: #{oad_forward.1} parent=0 // pred_check_branch
    %16 = sbr.rel (0) target = $region13
  $region12: #{oad_forward.1} parent=0 // pred_region
    _
  $region13: #{oad_forward.1} parent=0 // pred_fallthru
    _
  // Predicated region
  $region14: #{oad_forward.1} parent=0 // pred_check
    _
  $region15: #{oad_forward.1} parent=0 // pred_check_branch
    %18 = sbr.rel (0) target = $region17
  $region16: #{oad_forward.1} parent=0 // pred_region
    _
  $region17: #{oad_forward.1} parent=0 // pred_fallthru
    _
  // Predicated region
  $region18: #{oad_forward.1} parent=0 // pred_check
    _
  $region19: #{oad_forward.1} parent=0 // pred_check_branch
    %20 = sbr.rel (0) target = $region21
  $region20: #{oad_forward.1} parent=0 // pred_region
    _
  $region21: #{oad_forward.1} parent=0 // pred_fallthru
    _
  // Predicated region
  $region22: #{oad_forward.1} parent=0 // pred_check
    _
  $region23: #{oad_forward.1} parent=0 // pred_check_branch
    %22 = sbr.rel (0) target = $region25
  $region24: #{oad_forward.1} parent=0 // pred_region
    _
  $region25: #{oad_forward.1} parent=0 // pred_fallthru
    _
  %v23 = vld [vmem:[%s0] sm:$0xff]
  %v24 = vld [vmem:[%s0 + $0x8] sm:$0xff]
  %v25 = vld [vmem:[%s0 + $0x10] sm:$0xff]
  %v26 = vld [vmem:[%s0 + $0x18] sm:$0xff]
  %v27 = vld [vmem:[%s0 + $0x20] sm:$0xff]
  %v28 = vld [vmem:[%s0 + $0x28] sm:$0xff]
  %v29 = vld [vmem:[%s0 + $0x30] sm:$0xff]
  %v30 = vld [vmem:[%s0 + $0x38] sm:$0xff]
  %v31 = vld [vmem:[%s1] sm:$0xff]
  %v32 = vld [vmem:[%s1 + $0x8] sm:$0xff]
  %v33 = vld [vmem:[%s1 + $0x10] sm:$0xff]
  %v34 = vld [vmem:[%s1 + $0x18] sm:$0xff]
  %v35 = vld [vmem:[%s2] sm:$0x1]
  %v37 = vlaneseq
  %v38 = vshrl.u32 %v37, 7
  %v39 = vsub.s32 0, %v38
  %v40 = vrot.slane %v35, %v39
  %vm42 = vcmask 261120
  %v44 = vsel %vm42, %v23, 0
  %v47 = vsel %vm42, %v24, 0
  %v50 = vsel %vm42, %v25, 0
  %v53 = vsel %vm42, %v26, 0
  %v56 = vsel %vm42, %v27, 0
  %v59 = vsel %vm42, %v28, 0
  %v62 = vsel %vm42, %v29, 0
  %v65 = vsel %vm42, %v30, 0
  %67 = vmatprep.subr.mxu0 0.0
  %68 = vmatpush1.msra.mxu0 %v31
  %69 = vmatprep.subr.mxu0 0.0
  %70 = vmatpush1.msra.mxu0 %v32
  %71 = vmatprep.subr.mxu0 0.0
  %72 = vmatpush1.msra.mxu0 %v33
  %73 = vmatprep.subr.mxu0 0.0
  %74 = vmatpush1.msra.mxu0 %v34
  %75 = vmatprep.subr.mxu0 0.0
  %76 = vmatpush1.msra.mxu0 0.0
  %77 = vmatprep.subr.mxu0 0.0
  %78 = vmatpush1.msra.mxu0 0.0
  %79 = vmatprep.subr.mxu0 0.0
  %80 = vmatpush1.msra.mxu0 0.0
  %81 = vmatprep.subr.mxu0 0.0
  %82 = vmatpush1.msra.mxu0 0.0
  %83 = vmatprep.subr.mxu0 0.0
  %84 = vmatpush1.msra.mxu0 0.0
  %85 = vmatprep.subr.mxu0 0.0
  %86 = vmatpush1.msra.mxu0 0.0
  %87 = vmatprep.subr.mxu0 0.0
  %88 = vmatpush1.msra.mxu0 0.0
  %89 = vmatprep.subr.mxu0 0.0
  %90 = vmatpush1.msra.mxu0 0.0
  %91 = vmatprep.subr.mxu0 0.0
  %92 = vmatpush1.msra.mxu0 0.0
  %93 = vmatprep.subr.mxu0 0.0
  %94 = vmatpush1.msra.mxu0 0.0
  %95 = vmatprep.subr.mxu0 0.0
  %96 = vmatpush1.msra.mxu0 0.0
  %97 = vmatprep.subr.mxu0 0.0
  %98 = vmatpush1.msra.mxu0 0.0
  %99 = vmatprep.subr.mxu0 0.0
  %100 = vmatpush1.msra.mxu0 0.0
  %101 = vmatprep.subr.mxu0 0.0
  %102 = vmatpush1.msra.mxu0 0.0
  %103 = vmatprep.subr.mxu0 0.0
  %104 = vmatpush1.msra.mxu0 0.0
  %105 = vmatprep.subr.mxu0 0.0
  %106 = vmatpush1.msra.mxu0 0.0
  %107 = vmatprep.subr.mxu0 0.0
  %108 = vmatpush1.msra.mxu0 0.0
  %109 = vmatprep.subr.mxu0 0.0
  %110 = vmatpush1.msra.mxu0 0.0
  %111 = vmatprep.subr.mxu0 0.0
  %112 = vmatpush1.msra.mxu0 0.0
  %113 = vmatprep.subr.mxu0 0.0
  %114 = vmatpush1.msra.mxu0 0.0
  %115 = vmatprep.subr.mxu0 0.0
  %116 = vmatpush1.msra.mxu0 0.0
  %117 = vmatprep.subr.mxu0 0.0
  %118 = vmatpush1.msra.mxu0 0.0
  %119 = vmatprep.subr.mxu0 0.0
  %120 = vmatpush1.msra.mxu0 0.0
  %121 = vmatprep.subr.mxu0 0.0
  %122 = vmatpush1.msra.mxu0 0.0
  %123 = vmatprep.subr.mxu0 0.0
  %124 = vmatpush1.msra.mxu0 0.0
  %125 = vmatprep.subr.mxu0 0.0
  %126 = vmatpush1.msra.mxu0 0.0
  %127 = vmatprep.subr.mxu0 0.0
  %128 = vmatpush1.msra.mxu0 0.0
  %129 = vmatprep.subr.mxu0 0.0
  %130 = vmatpush1.msra.mxu0 0.0
  %131 = vmatprep.mubr.f32.mxu0 0.0
  %132 = vmatmul.mubr.f32.gmra.mrb[0].mxu0 %v44
  %v133 = vpop.f32.mrb[0].mxu0
  %v134 = vadd.f32 %v40, %v133
  %v135 = vpop.f32.mrb[0].mxu0
  %136 = vmatprep.mubr.f32.mxu0 0.0
  %137 = vmatmul.mubr.f32.gmra.mrb[0].mxu0 %v47
  %v138 = vpop.f32.mrb[0].mxu0
  %v139 = vadd.f32 %v40, %v138
  %v140 = vpop.f32.mrb[0].mxu0
  %141 = vmatprep.mubr.f32.mxu0 0.0
  %142 = vmatmul.mubr.f32.gmra.mrb[0].mxu0 %v50
  %v143 = vpop.f32.mrb[0].mxu0
  %v144 = vadd.f32 %v40, %v143
  %v145 = vpop.f32.mrb[0].mxu0
  %146 = vmatprep.mubr.f32.mxu0 0.0
  %147 = vmatmul.mubr.f32.gmra.mrb[0].mxu0 %v53
  %v148 = vpop.f32.mrb[0].mxu0
  %v149 = vadd.f32 %v40, %v148
  %v150 = vpop.f32.mrb[0].mxu0
  %151 = vmatprep.mubr.f32.mxu0 0.0
  %152 = vmatmul.mubr.f32.gmra.mrb[0].mxu0 %v56
  %v153 = vpop.f32.mrb[0].mxu0
  %v154 = vadd.f32 %v40, %v153
  %v155 = vpop.f32.mrb[0].mxu0
  %156 = vmatprep.mubr.f32.mxu0 0.0
  %157 = vmatmul.mubr.f32.gmra.mrb[0].mxu0 %v59
  %v158 = vpop.f32.mrb[0].mxu0
  %v159 = vadd.f32 %v40, %v158
  %v160 = vpop.f32.mrb[0].mxu0
  %161 = vmatprep.mubr.f32.mxu0 0.0
  %162 = vmatmul.mubr.f32.gmra.mrb[0].mxu0 %v62
  %v163 = vpop.f32.mrb[0].mxu0
  %v164 = vadd.f32 %v40, %v163
  %v165 = vpop.f32.mrb[0].mxu0
  %166 = vmatprep.mubr.f32.mxu0 0.0
  %167 = vmatmul.mubr.f32.gmra.mrb[0].mxu0 %v65
  %v168 = vpop.f32.mrb[0].mxu0
  %v169 = vadd.f32 %v40, %v168
  %v170 = vpop.f32.mrb[0].mxu0
  %171 = vdwg.mxu0
  %v172 = vmax.f32 %v134, 0.0
  %v173 = vmax.f32 %v139, 0.0
  %v174 = vmax.f32 %v144, 0.0
  %v175 = vmax.f32 %v149, 0.0
  %v176 = vmax.f32 %v154, 0.0
  %v177 = vmax.f32 %v159, 0.0
  %v178 = vmax.f32 %v164, 0.0
  %v179 = vmax.f32 %v169, 0.0
  %v180 = vld [vmem:[%s3] sm:$0xff]
  %v181 = vld [vmem:[%s3 + $0x8] sm:$0xff]
  %v182 = vld [vmem:[%s3 + $0x10] sm:$0xff]
  %v183 = vld [vmem:[%s3 + $0x18] sm:$0xff]
  %v184 = vld [vmem:[%s5] sm:$0x1]
  %v186 = vlaneseq
  %v187 = vshrl.u32 %v186, 7
  %v188 = vsub.s32 0, %v187
  %v189 = vrot.slane %v184, %v188
  %v192 = vsel %vm42, %v172, 0
  %v195 = vsel %vm42, %v173, 0
  %v198 = vsel %vm42, %v174, 0
  %v201 = vsel %vm42, %v175, 0
  %v204 = vsel %vm42, %v176, 0
  %v207 = vsel %vm42, %v177, 0
  %v210 = vsel %vm42, %v178, 0
  %v213 = vsel %vm42, %v179, 0
  %215 = vmatprep.subr.mxu0 0.0
  %216 = vmatpush1.msra.mxu0 %v180
  %217 = vmatprep.subr.mxu0 0.0
  %218 = vmatpush1.msra.mxu0 %v181
  %219 = vmatprep.subr.mxu0 0.0
  %220 = vmatpush1.msra.mxu0 %v182
  %221 = vmatprep.subr.mxu0 0.0
  %222 = vmatpush1.msra.mxu0 %v183
  %223 = vmatprep.subr.mxu0 0.0
  %224 = vmatpush1.msra.mxu0 0.0
  %225 = vmatprep.subr.mxu0 0.0
  %226 = vmatpush1.msra.mxu0 0.0
  %227 = vmatprep.subr.mxu0 0.0
  %228 = vmatpush1.msra.mxu0 0.0
  %229 = vmatprep.subr.mxu0 0.0
  %230 = vmatpush1.msra.mxu0 0.0
  %231 = vmatprep.subr.mxu0 0.0
  %232 = vmatpush1.msra.mxu0 0.0
  %233 = vmatprep.subr.mxu0 0.0
  %234 = vmatpush1.msra.mxu0 0.0
  %235 = vmatprep.subr.mxu0 0.0
  %236 = vmatpush1.msra.mxu0 0.0
  %237 = vmatprep.subr.mxu0 0.0
  %238 = vmatpush1.msra.mxu0 0.0
  %239 = vmatprep.subr.mxu0 0.0
  %240 = vmatpush1.msra.mxu0 0.0
  %241 = vmatprep.subr.mxu0 0.0
  %242 = vmatpush1.msra.mxu0 0.0
  %243 = vmatprep.subr.mxu0 0.0
  %244 = vmatpush1.msra.mxu0 0.0
  %245 = vmatprep.subr.mxu0 0.0
  %246 = vmatpush1.msra.mxu0 0.0
  %247 = vmatprep.subr.mxu0 0.0
  %248 = vmatpush1.msra.mxu0 0.0
  %249 = vmatprep.subr.mxu0 0.0
  %250 = vmatpush1.msra.mxu0 0.0
  %251 = vmatprep.subr.mxu0 0.0
  %252 = vmatpush1.msra.mxu0 0.0
  %253 = vmatprep.subr.mxu0 0.0
  %254 = vmatpush1.msra.mxu0 0.0
  %255 = vmatprep.subr.mxu0 0.0
  %256 = vmatpush1.msra.mxu0 0.0
  %257 = vmatprep.subr.mxu0 0.0
  %258 = vmatpush1.msra.mxu0 0.0
  %259 = vmatprep.subr.mxu0 0.0
  %260 = vmatpush1.msra.mxu0 0.0
  %261 = vmatprep.subr.mxu0 0.0
  %262 = vmatpush1.msra.mxu0 0.0
  %263 = vmatprep.subr.mxu0 0.0
  %264 = vmatpush1.msra.mxu0 0.0
  %265 = vmatprep.subr.mxu0 0.0
  %266 = vmatpush1.msra.mxu0 0.0
  %267 = vmatprep.subr.mxu0 0.0
  %268 = vmatpush1.msra.mxu0 0.0
  %269 = vmatprep.subr.mxu0 0.0
  %270 = vmatpush1.msra.mxu0 0.0
  %271 = vmatprep.subr.mxu0 0.0
  %272 = vmatpush1.msra.mxu0 0.0
  %273 = vmatprep.subr.mxu0 0.0
  %274 = vmatpush1.msra.mxu0 0.0
  %275 = vmatprep.subr.mxu0 0.0
  %276 = vmatpush1.msra.mxu0 0.0
  %277 = vmatprep.subr.mxu0 0.0
  %278 = vmatpush1.msra.mxu0 0.0
  %279 = vmatprep.mubr.f32.mxu0 0.0
  %280 = vmatmul.mubr.f32.gmra.mrb[0].mxu0 %v192
  %v281 = vpop.f32.mrb[0].mxu0
  %v282 = vadd.f32 %v189, %v281
  %v283 = vpop.f32.mrb[0].mxu0
  %284 = vmatprep.mubr.f32.mxu0 0.0
  %285 = vmatmul.mubr.f32.gmra.mrb[0].mxu0 %v195
  %v286 = vpop.f32.mrb[0].mxu0
  %v287 = vadd.f32 %v189, %v286
  %v288 = vpop.f32.mrb[0].mxu0
  %289 = vmatprep.mubr.f32.mxu0 0.0
  %290 = vmatmul.mubr.f32.gmra.mrb[0].mxu0 %v198
  %v291 = vpop.f32.mrb[0].mxu0
  %v292 = vadd.f32 %v189, %v291
  %v293 = vpop.f32.mrb[0].mxu0
  %294 = vmatprep.mubr.f32.mxu0 0.0
  %295 = vmatmul.mubr.f32.gmra.mrb[0].mxu0 %v201
  %v296 = vpop.f32.mrb[0].mxu0
  %v297 = vadd.f32 %v189, %v296
  %v298 = vpop.f32.mrb[0].mxu0
  %299 = vmatprep.mubr.f32.mxu0 0.0
  %300 = vmatmul.mubr.f32.gmra.mrb[0].mxu0 %v204
  %v301 = vpop.f32.mrb[0].mxu0
  %v302 = vadd.f32 %v189, %v301
  %v303 = vpop.f32.mrb[0].mxu0
  %304 = vmatprep.mubr.f32.mxu0 0.0
  %305 = vmatmul.mubr.f32.gmra.mrb[0].mxu0 %v207
  %v306 = vpop.f32.mrb[0].mxu0
  %v307 = vadd.f32 %v189, %v306
  %v308 = vpop.f32.mrb[0].mxu0
  %309 = vmatprep.mubr.f32.mxu0 0.0
  %310 = vmatmul.mubr.f32.gmra.mrb[0].mxu0 %v210
  %v311 = vpop.f32.mrb[0].mxu0
  %v312 = vadd.f32 %v189, %v311
  %v313 = vpop.f32.mrb[0].mxu0
  %314 = vmatprep.mubr.f32.mxu0 0.0
  %315 = vmatmul.mubr.f32.gmra.mrb[0].mxu0 %v213
  %v316 = vpop.f32.mrb[0].mxu0
  %v317 = vadd.f32 %v189, %v316
  %v318 = vpop.f32.mrb[0].mxu0
  %319 = vdwg.mxu0
  %320 = vst [vmem:[#allocation2] sm:$0xff] %v282
  %321 = vst [vmem:[#allocation2 + $0x8] sm:$0xff] %v287
  %322 = vst [vmem:[#allocation2 + $0x10] sm:$0xff] %v292
  %323 = vst [vmem:[#allocation2 + $0x18] sm:$0xff] %v297
  %324 = vst [vmem:[#allocation2 + $0x20] sm:$0xff] %v302
  %325 = vst [vmem:[#allocation2 + $0x28] sm:$0xff] %v307
  %326 = vst [vmem:[#allocation2 + $0x30] sm:$0xff] %v312
  %327 = vst [vmem:[#allocation2 + $0x38] sm:$0xff] %v317
  %v328 = vld [vmem:[%s4] sm:$0xff]
  %v329 = vld [vmem:[%s4 + $0x8] sm:$0xff]
  %v330 = vld [vmem:[%s4 + $0x10] sm:$0xff]
  %v331 = vld [vmem:[%s4 + $0x18] sm:$0xff]
  %v332 = vld [vmem:[#allocation2] sm:$0xff]
  %v334 = vsel %vm42, 0.0, 0
  %336 = vmatprep.subr.mxu0 0.0
  %337 = vmatpush1.msra.mxu0 %v328
  %338 = vmatprep.subr.mxu0 0.0
  %339 = vmatpush1.msra.mxu0 %v329
  %340 = vmatprep.subr.mxu0 0.0
  %341 = vmatpush1.msra.mxu0 %v330
  %342 = vmatprep.subr.mxu0 0.0
  %343 = vmatpush1.msra.mxu0 %v331
  %344 = vmatprep.subr.mxu0 0.0
  %345 = vmatpush1.msra.mxu0 0.0
  %346 = vmatprep.subr.mxu0 0.0
  %347 = vmatpush1.msra.mxu0 0.0
  %348 = vmatprep.subr.mxu0 0.0
  %349 = vmatpush1.msra.mxu0 0.0
  %350 = vmatprep.subr.mxu0 0.0
  %351 = vmatpush1.msra.mxu0 0.0
  %352 = vmatprep.subr.mxu0 0.0
  %353 = vmatpush1.msra.mxu0 0.0
  %354 = vmatprep.subr.mxu0 0.0
  %355 = vmatpush1.msra.mxu0 0.0
  %356 = vmatprep.subr.mxu0 0.0
  %357 = vmatpush1.msra.mxu0 0.0
  %358 = vmatprep.subr.mxu0 0.0
  %359 = vmatpush1.msra.mxu0 0.0
  %360 = vmatprep.subr.mxu0 0.0
  %361 = vmatpush1.msra.mxu0 0.0
  %362 = vmatprep.subr.mxu0 0.0
  %363 = vmatpush1.msra.mxu0 0.0
  %364 = vmatprep.subr.mxu0 0.0
  %365 = vmatpush1.msra.mxu0 0.0
  %366 = vmatprep.subr.mxu0 0.0
  %367 = vmatpush1.msra.mxu0 0.0
  %368 = vmatprep.subr.mxu0 0.0
  %369 = vmatpush1.msra.mxu0 0.0
  %370 = vmatprep.subr.mxu0 0.0
  %371 = vmatpush1.msra.mxu0 0.0
  %372 = vmatprep.subr.mxu0 0.0
  %373 = vmatpush1.msra.mxu0 0.0
  %374 = vmatprep.subr.mxu0 0.0
  %375 = vmatpush1.msra.mxu0 0.0
  %376 = vmatprep.subr.mxu0 0.0
  %377 = vmatpush1.msra.mxu0 0.0
  %378 = vmatprep.subr.mxu0 0.0
  %379 = vmatpush1.msra.mxu0 0.0
  %380 = vmatprep.subr.mxu0 0.0
  %381 = vmatpush1.msra.mxu0 0.0
  %382 = vmatprep.subr.mxu0 0.0
  %383 = vmatpush1.msra.mxu0 0.0
  %384 = vmatprep.subr.mxu0 0.0
  %385 = vmatpush1.msra.mxu0 0.0
  %386 = vmatprep.subr.mxu0 0.0
  %387 = vmatpush1.msra.mxu0 0.0
  %388 = vmatprep.subr.mxu0 0.0
  %389 = vmatpush1.msra.mxu0 0.0
  %390 = vmatprep.subr.mxu0 0.0
  %391 = vmatpush1.msra.mxu0 0.0
  %392 = vmatprep.subr.mxu0 0.0
  %393 = vmatpush1.msra.mxu0 0.0
  %394 = vmatprep.subr.mxu0 0.0
  %395 = vmatpush1.msra.mxu0 0.0
  %396 = vmatprep.subr.mxu0 0.0
  %397 = vmatpush1.msra.mxu0 0.0
  %398 = vmatprep.subr.mxu0 0.0
  %399 = vmatpush1.msra.mxu0 0.0
  %400 = vmatprep.mubr.f32.mxu0 0.0
  %401 = vmatmul.mubr.f32.gmra.mrb[0].mxu0 %v334
  %v402 = vpop.f32.mrb[0].mxu0
  %v403 = vadd.f32 0.0, %v402
  %v404 = vpop.f32.mrb[0].mxu0
  %405 = vdwg.mxu0
  %v406 = vadd.f32 %v332, %v403
  %v407 = vxor.u32 %v406, 2147483648
  %v408 = vmul.f32 %v407, 1.442695
  %v409 = vpow.pop %v408
  %v410 = vadd.f32 %v409, 1.0
  %v411 = vrcp.pop %v410
  %v412 = vmul.f32 1.0, %v411
  %v413 = vtanh.pop %v406
  %v414 = vmul.f32 %v412, 0.0
  %416 = vrot.lane.b32.xlu0 %v413, 64
  %v417 = vpop.permute.xlu0 %416
  %v419 = vmul.f32 %v412, %v417
  %421 = vrot.lane.b32.xlu0 %v419, 32
  %v422 = vpop.permute.xlu0 %421
  %v424 = vadd.f32 %v414, %v422
  %v425 = vtanh.pop %v424
  %427 = vrot.lane.b32.xlu0 %v425, 64
  %v428 = vpop.permute.xlu0 %427
  %v430 = vmul.f32 %v412, %v428
  %432 = vrot.lane.b32.xlu0 %v430, 32
  %v433 = vpop.permute.xlu0 %432
  %435 = vst.msk [vmem:[%s6] sm:$0xff] %vm42, %v433
  %s436 = scalar_lea.vmem [#allocation2], 8
  %v437 = vld [vmem:[%s436] sm:$0xff]
  %v438 = vsel %vm42, %v433, 0
  %440 = vmatprep.subr.mxu0 0.0
  %441 = vmatpush1.msra.mxu0 %v328
  %442 = vmatprep.subr.mxu0 0.0
  %443 = vmatpush1.msra.mxu0 %v329
  %444 = vmatprep.subr.mxu0 0.0
  %445 = vmatpush1.msra.mxu0 %v330
  %446 = vmatprep.subr.mxu0 0.0
  %447 = vmatpush1.msra.mxu0 %v331
  %448 = vmatprep.subr.mxu0 0.0
  %449 = vmatpush1.msra.mxu0 0.0
  %450 = vmatprep.subr.mxu0 0.0
  %451 = vmatpush1.msra.mxu0 0.0
  %452 = vmatprep.subr.mxu0 0.0
  %453 = vmatpush1.msra.mxu0 0.0
  %454 = vmatprep.subr.mxu0 0.0
  %455 = vmatpush1.msra.mxu0 0.0
  %456 = vmatprep.subr.mxu0 0.0
  %457 = vmatpush1.msra.mxu0 0.0
  %458 = vmatprep.subr.mxu0 0.0
  %459 = vmatpush1.msra.mxu0 0.0
  %460 = vmatprep.subr.mxu0 0.0
  %461 = vmatpush1.msra.mxu0 0.0
  %462 = vmatprep.subr.mxu0 0.0
  %463 = vmatpush1.msra.mxu0 0.0
  %464 = vmatprep.subr.mxu0 0.0
  %465 = vmatpush1.msra.mxu0 0.0
  %466 = vmatprep.subr.mxu0 0.0
  %467 = vmatpush1.msra.mxu0 0.0
  %468 = vmatprep.subr.mxu0 0.0
  %469 = vmatpush1.msra.mxu0 0.0
  %470 = vmatprep.subr.mxu0 0.0
  %471 = vmatpush1.msra.mxu0 0.0
  %472 = vmatprep.subr.mxu0 0.0
  %473 = vmatpush1.msra.mxu0 0.0
  %474 = vmatprep.subr.mxu0 0.0
  %475 = vmatpush1.msra.mxu0 0.0
  %476 = vmatprep.subr.mxu0 0.0
  %477 = vmatpush1.msra.mxu0 0.0
  %478 = vmatprep.subr.mxu0 0.0
  %479 = vmatpush1.msra.mxu0 0.0
  %480 = vmatprep.subr.mxu0 0.0
  %481 = vmatpush1.msra.mxu0 0.0
  %482 = vmatprep.subr.mxu0 0.0
  %483 = vmatpush1.msra.mxu0 0.0
  %484 = vmatprep.subr.mxu0 0.0
  %485 = vmatpush1.msra.mxu0 0.0
  %486 = vmatprep.subr.mxu0 0.0
  %487 = vmatpush1.msra.mxu0 0.0
  %488 = vmatprep.subr.mxu0 0.0
  %489 = vmatpush1.msra.mxu0 0.0
  %490 = vmatprep.subr.mxu0 0.0
  %491 = vmatpush1.msra.mxu0 0.0
  %492 = vmatprep.subr.mxu0 0.0
  %493 = vmatpush1.msra.mxu0 0.0
  %494 = vmatprep.subr.mxu0 0.0
  %495 = vmatpush1.msra.mxu0 0.0
  %496 = vmatprep.subr.mxu0 0.0
  %497 = vmatpush1.msra.mxu0 0.0
  %498 = vmatprep.subr.mxu0 0.0
  %499 = vmatpush1.msra.mxu0 0.0
  %500 = vmatprep.subr.mxu0 0.0
  %501 = vmatpush1.msra.mxu0 0.0
  %502 = vmatprep.subr.mxu0 0.0
  %503 = vmatpush1.msra.mxu0 0.0
  %504 = vmatprep.mubr.f32.mxu0 0.0
  %505 = vmatmul.mubr.f32.gmra.mrb[0].mxu0 %v438
  %v506 = vpop.f32.mrb[0].mxu0
  %v507 = vadd.f32 0.0, %v506
  %v508 = vpop.f32.mrb[0].mxu0
  %509 = vdwg.mxu0
  %v510 = vadd.f32 %v437, %v507
  %v511 = vxor.u32 %v510, 2147483648
  %v512 = vmul.f32 %v511, 1.442695
  %v513 = vpow.pop %v512
  %v514 = vadd.f32 %v513, 1.0
  %v515 = vrcp.pop %v514
  %v516 = vmul.f32 1.0, %v515
  %v517 = vtanh.pop %v510
  %v518 = vmul.f32 %v516, %v424
  %520 = vrot.lane.b32.xlu0 %v517, 64
  %v521 = vpop.permute.xlu0 %520
  %v523 = vmul.f32 %v516, %v521
  %525 = vrot.lane.b32.xlu0 %v523, 32
  %v526 = vpop.permute.xlu0 %525
  %v528 = vadd.f32 %v518, %v526
  %v529 = vtanh.pop %v528
  %531 = vrot.lane.b32.xlu0 %v529, 64
  %v532 = vpop.permute.xlu0 %531
  %v534 = vmul.f32 %v516, %v532
  %536 = vrot.lane.b32.xlu0 %v534, 32
  %v537 = vpop.permute.xlu0 %536
  %s539 = scalar_lea.vmem %s6, 8
  %540 = vst.msk [vmem:[%s539] sm:$0xff] %vm42, %v537
  %s541 = scalar_lea.vmem [#allocation2], 16
  %v542 = vld [vmem:[%s541] sm:$0xff]
  %v543 = vsel %vm42, %v537, 0
  %545 = vmatprep.subr.mxu0 0.0
  %546 = vmatpush1.msra.mxu0 %v328
  %547 = vmatprep.subr.mxu0 0.0
  %548 = vmatpush1.msra.mxu0 %v329
  %549 = vmatprep.subr.mxu0 0.0
  %550 = vmatpush1.msra.mxu0 %v330
  %551 = vmatprep.subr.mxu0 0.0
  %552 = vmatpush1.msra.mxu0 %v331
  %553 = vmatprep.subr.mxu0 0.0
  %554 = vmatpush1.msra.mxu0 0.0
  %555 = vmatprep.subr.mxu0 0.0
  %556 = vmatpush1.msra.mxu0 0.0
  %557 = vmatprep.subr.mxu0 0.0
  %558 = vmatpush1.msra.mxu0 0.0
  %559 = vmatprep.subr.mxu0 0.0
  %560 = vmatpush1.msra.mxu0 0.0
  %561 = vmatprep.subr.mxu0 0.0
  %562 = vmatpush1.msra.mxu0 0.0
  %563 = vmatprep.subr.mxu0 0.0
  %564 = vmatpush1.msra.mxu0 0.0
  %565 = vmatprep.subr.mxu0 0.0
  %566 = vmatpush1.msra.mxu0 0.0
  %567 = vmatprep.subr.mxu0 0.0
  %568 = vmatpush1.msra.mxu0 0.0
  %569 = vmatprep.subr.mxu0 0.0
  %570 = vmatpush1.msra.mxu0 0.0
  %571 = vmatprep.subr.mxu0 0.0
  %572 = vmatpush1.msra.mxu0 0.0
  %573 = vmatprep.subr.mxu0 0.0
  %574 = vmatpush1.msra.mxu0 0.0
  %575 = vmatprep.subr.mxu0 0.0
  %576 = vmatpush1.msra.mxu0 0.0
  %577 = vmatprep.subr.mxu0 0.0
  %578 = vmatpush1.msra.mxu0 0.0
  %579 = vmatprep.subr.mxu0 0.0
  %580 = vmatpush1.msra.mxu0 0.0
  %581 = vmatprep.subr.mxu0 0.0
  %582 = vmatpush1.msra.mxu0 0.0
  %583 = vmatprep.subr.mxu0 0.0
  %584 = vmatpush1.msra.mxu0 0.0
  %585 = vmatprep.subr.mxu0 0.0
  %586 = vmatpush1.msra.mxu0 0.0
  %587 = vmatprep.subr.mxu0 0.0
  %588 = vmatpush1.msra.mxu0 0.0
  %589 = vmatprep.subr.mxu0 0.0
  %590 = vmatpush1.msra.mxu0 0.0
  %591 = vmatprep.subr.mxu0 0.0
  %592 = vmatpush1.msra.mxu0 0.0
  %593 = vmatprep.subr.mxu0 0.0
  %594 = vmatpush1.msra.mxu0 0.0
  %595 = vmatprep.subr.mxu0 0.0
  %596 = vmatpush1.msra.mxu0 0.0
  %597 = vmatprep.subr.mxu0 0.0
  %598 = vmatpush1.msra.mxu0 0.0
  %599 = vmatprep.subr.mxu0 0.0
  %600 = vmatpush1.msra.mxu0 0.0
  %601 = vmatprep.subr.mxu0 0.0
  %602 = vmatpush1.msra.mxu0 0.0
  %603 = vmatprep.subr.mxu0 0.0
  %604 = vmatpush1.msra.mxu0 0.0
  %605 = vmatprep.subr.mxu0 0.0
  %606 = vmatpush1.msra.mxu0 0.0
  %607 = vmatprep.subr.mxu0 0.0
  %608 = vmatpush1.msra.mxu0 0.0
  %609 = vmatprep.mubr.f32.mxu0 0.0
  %610 = vmatmul.mubr.f32.gmra.mrb[0].mxu0 %v543
  %v611 = vpop.f32.mrb[0].mxu0
  %v612 = vadd.f32 0.0, %v611
  %v613 = vpop.f32.mrb[0].mxu0
  %614 = vdwg.mxu0
  %v615 = vadd.f32 %v542, %v612
  %v616 = vxor.u32 %v615, 2147483648
  %v617 = vmul.f32 %v616, 1.442695
  %v618 = vpow.pop %v617
  %v619 = vadd.f32 %v618, 1.0
  %v620 = vrcp.pop %v619
  %v621 = vmul.f32 1.0, %v620
  %v622 = vtanh.pop %v615
  %v623 = vmul.f32 %v621, %v528
  %625 = vrot.lane.b32.xlu0 %v622, 64
  %v626 = vpop.permute.xlu0 %625
  %v628 = vmul.f32 %v621, %v626
  %630 = vrot.lane.b32.xlu0 %v628, 32
  %v631 = vpop.permute.xlu0 %630
  %v633 = vadd.f32 %v623, %v631
  %v634 = vtanh.pop %v633
  %636 = vrot.lane.b32.xlu0 %v634, 64
  %v637 = vpop.permute.xlu0 %636
  %v639 = vmul.f32 %v621, %v637
  %641 = vrot.lane.b32.xlu0 %v639, 32
  %v642 = vpop.permute.xlu0 %641
  %s644 = scalar_lea.vmem %s6, 16
  %645 = vst.msk [vmem:[%s644] sm:$0xff] %vm42, %v642
  %s646 = scalar_lea.vmem [#allocation2], 24
  %v647 = vld [vmem:[%s646] sm:$0xff]
  %v648 = vsel %vm42, %v642, 0
  %650 = vmatprep.subr.mxu0 0.0
  %651 = vmatpush1.msra.mxu0 %v328
  %652 = vmatprep.subr.mxu0 0.0
  %653 = vmatpush1.msra.mxu0 %v329
  %654 = vmatprep.subr.mxu0 0.0
  %655 = vmatpush1.msra.mxu0 %v330
  %656 = vmatprep.subr.mxu0 0.0
  %657 = vmatpush1.msra.mxu0 %v331
  %658 = vmatprep.subr.mxu0 0.0
  %659 = vmatpush1.msra.mxu0 0.0
  %660 = vmatprep.subr.mxu0 0.0
  %661 = vmatpush1.msra.mxu0 0.0
  %662 = vmatprep.subr.mxu0 0.0
  %663 = vmatpush1.msra.mxu0 0.0
  %664 = vmatprep.subr.mxu0 0.0
  %665 = vmatpush1.msra.mxu0 0.0
  %666 = vmatprep.subr.mxu0 0.0
  %667 = vmatpush1.msra.mxu0 0.0
  %668 = vmatprep.subr.mxu0 0.0
  %669 = vmatpush1.msra.mxu0 0.0
  %670 = vmatprep.subr.mxu0 0.0
  %671 = vmatpush1.msra.mxu0 0.0
  %672 = vmatprep.subr.mxu0 0.0
  %673 = vmatpush1.msra.mxu0 0.0
  %674 = vmatprep.subr.mxu0 0.0
  %675 = vmatpush1.msra.mxu0 0.0
  %676 = vmatprep.subr.mxu0 0.0
  %677 = vmatpush1.msra.mxu0 0.0
  %678 = vmatprep.subr.mxu0 0.0
  %679 = vmatpush1.msra.mxu0 0.0
  %680 = vmatprep.subr.mxu0 0.0
  %681 = vmatpush1.msra.mxu0 0.0
  %682 = vmatprep.subr.mxu0 0.0
  %683 = vmatpush1.msra.mxu0 0.0
  %684 = vmatprep.subr.mxu0 0.0
  %685 = vmatpush1.msra.mxu0 0.0
  %686 = vmatprep.subr.mxu0 0.0
  %687 = vmatpush1.msra.mxu0 0.0
  %688 = vmatprep.subr.mxu0 0.0
  %689 = vmatpush1.msra.mxu0 0.0
  %690 = vmatprep.subr.mxu0 0.0
  %691 = vmatpush1.msra.mxu0 0.0
  %692 = vmatprep.subr.mxu0 0.0
  %693 = vmatpush1.msra.mxu0 0.0
  %694 = vmatprep.subr.mxu0 0.0
  %695 = vmatpush1.msra.mxu0 0.0
  %696 = vmatprep.subr.mxu0 0.0
  %697 = vmatpush1.msra.mxu0 0.0
  %698 = vmatprep.subr.mxu0 0.0
  %699 = vmatpush1.msra.mxu0 0.0
  %700 = vmatprep.subr.mxu0 0.0
  %701 = vmatpush1.msra.mxu0 0.0
  %702 = vmatprep.subr.mxu0 0.0
  %703 = vmatpush1.msra.mxu0 0.0
  %704 = vmatprep.subr.mxu0 0.0
  %705 = vmatpush1.msra.mxu0 0.0
  %706 = vmatprep.subr.mxu0 0.0
  %707 = vmatpush1.msra.mxu0 0.0
  %708 = vmatprep.subr.mxu0 0.0
  %709 = vmatpush1.msra.mxu0 0.0
  %710 = vmatprep.subr.mxu0 0.0
  %711 = vmatpush1.msra.mxu0 0.0
  %712 = vmatprep.subr.mxu0 0.0
  %713 = vmatpush1.msra.mxu0 0.0
  %714 = vmatprep.mubr.f32.mxu0 0.0
  %715 = vmatmul.mubr.f32.gmra.mrb[0].mxu0 %v648
  %v716 = vpop.f32.mrb[0].mxu0
  %v717 = vadd.f32 0.0, %v716
  %v718 = vpop.f32.mrb[0].mxu0
  %719 = vdwg.mxu0
  %v720 = vadd.f32 %v647, %v717
  %v721 = vxor.u32 %v720, 2147483648
  %v722 = vmul.f32 %v721, 1.442695
  %v723 = vpow.pop %v722
  %v724 = vadd.f32 %v723, 1.0
  %v725 = vrcp.pop %v724
  %v726 = vmul.f32 1.0, %v725
  %v727 = vtanh.pop %v720
  %v728 = vmul.f32 %v726, %v633
  %730 = vrot.lane.b32.xlu0 %v727, 64
  %v731 = vpop.permute.xlu0 %730
  %v733 = vmul.f32 %v726, %v731
  %735 = vrot.lane.b32.xlu0 %v733, 32
  %v736 = vpop.permute.xlu0 %735
  %v738 = vadd.f32 %v728, %v736
  %v739 = vtanh.pop %v738
  %741 = vrot.lane.b32.xlu0 %v739, 64
  %v742 = vpop.permute.xlu0 %741
  %v744 = vmul.f32 %v726, %v742
  %746 = vrot.lane.b32.xlu0 %v744, 32
  %v747 = vpop.permute.xlu0 %746
  %s749 = scalar_lea.vmem %s6, 24
  %750 = vst.msk [vmem:[%s749] sm:$0xff] %vm42, %v747
  %s751 = scalar_lea.vmem [#allocation2], 32
  %v752 = vld [vmem:[%s751] sm:$0xff]
  %v753 = vsel %vm42, %v747, 0
  %755 = vmatprep.subr.mxu0 0.0
  %756 = vmatpush1.msra.mxu0 %v328
  %757 = vmatprep.subr.mxu0 0.0
  %758 = vmatpush1.msra.mxu0 %v329
  %759 = vmatprep.subr.mxu0 0.0
  %760 = vmatpush1.msra.mxu0 %v330
  %761 = vmatprep.subr.mxu0 0.0
  %762 = vmatpush1.msra.mxu0 %v331
  %763 = vmatprep.subr.mxu0 0.0
  %764 = vmatpush1.msra.mxu0 0.0
  %765 = vmatprep.subr.mxu0 0.0
  %766 = vmatpush1.msra.mxu0 0.0
  %767 = vmatprep.subr.mxu0 0.0
  %768 = vmatpush1.msra.mxu0 0.0
  %769 = vmatprep.subr.mxu0 0.0
  %770 = vmatpush1.msra.mxu0 0.0
  %771 = vmatprep.subr.mxu0 0.0
  %772 = vmatpush1.msra.mxu0 0.0
  %773 = vmatprep.subr.mxu0 0.0
  %774 = vmatpush1.msra.mxu0 0.0
  %775 = vmatprep.subr.mxu0 0.0
  %776 = vmatpush1.msra.mxu0 0.0
  %777 = vmatprep.subr.mxu0 0.0
  %778 = vmatpush1.msra.mxu0 0.0
  %779 = vmatprep.subr.mxu0 0.0
  %780 = vmatpush1.msra.mxu0 0.0
  %781 = vmatprep.subr.mxu0 0.0
  %782 = vmatpush1.msra.mxu0 0.0
  %783 = vmatprep.subr.mxu0 0.0
  %784 = vmatpush1.msra.mxu0 0.0
  %785 = vmatprep.subr.mxu0 0.0
  %786 = vmatpush1.msra.mxu0 0.0
  %787 = vmatprep.subr.mxu0 0.0
  %788 = vmatpush1.msra.mxu0 0.0
  %789 = vmatprep.subr.mxu0 0.0
  %790 = vmatpush1.msra.mxu0 0.0
  %791 = vmatprep.subr.mxu0 0.0
  %792 = vmatpush1.msra.mxu0 0.0
  %793 = vmatprep.subr.mxu0 0.0
  %794 = vmatpush1.msra.mxu0 0.0
  %795 = vmatprep.subr.mxu0 0.0
  %796 = vmatpush1.msra.mxu0 0.0
  %797 = vmatprep.subr.mxu0 0.0
  %798 = vmatpush1.msra.mxu0 0.0
  %799 = vmatprep.subr.mxu0 0.0
  %800 = vmatpush1.msra.mxu0 0.0
  %801 = vmatprep.subr.mxu0 0.0
  %802 = vmatpush1.msra.mxu0 0.0
  %803 = vmatprep.subr.mxu0 0.0
  %804 = vmatpush1.msra.mxu0 0.0
  %805 = vmatprep.subr.mxu0 0.0
  %806 = vmatpush1.msra.mxu0 0.0
  %807 = vmatprep.subr.mxu0 0.0
  %808 = vmatpush1.msra.mxu0 0.0
  %809 = vmatprep.subr.mxu0 0.0
  %810 = vmatpush1.msra.mxu0 0.0
  %811 = vmatprep.subr.mxu0 0.0
  %812 = vmatpush1.msra.mxu0 0.0
  %813 = vmatprep.subr.mxu0 0.0
  %814 = vmatpush1.msra.mxu0 0.0
  %815 = vmatprep.subr.mxu0 0.0
  %816 = vmatpush1.msra.mxu0 0.0
  %817 = vmatprep.subr.mxu0 0.0
  %818 = vmatpush1.msra.mxu0 0.0
  %819 = vmatprep.mubr.f32.mxu0 0.0
  %820 = vmatmul.mubr.f32.gmra.mrb[0].mxu0 %v753
  %v821 = vpop.f32.mrb[0].mxu0
  %v822 = vadd.f32 0.0, %v821
  %v823 = vpop.f32.mrb[0].mxu0
  %824 = vdwg.mxu0
  %v825 = vadd.f32 %v752, %v822
  %v826 = vxor.u32 %v825, 2147483648
  %v827 = vmul.f32 %v826, 1.442695
  %v828 = vpow.pop %v827
  %v829 = vadd.f32 %v828, 1.0
  %v830 = vrcp.pop %v829
  %v831 = vmul.f32 1.0, %v830
  %v832 = vtanh.pop %v825
  %v833 = vmul.f32 %v831, %v738
  %835 = vrot.lane.b32.xlu0 %v832, 64
  %v836 = vpop.permute.xlu0 %835
  %v838 = vmul.f32 %v831, %v836
  %840 = vrot.lane.b32.xlu0 %v838, 32
  %v841 = vpop.permute.xlu0 %840
  %v843 = vadd.f32 %v833, %v841
  %v844 = vtanh.pop %v843
  %846 = vrot.lane.b32.xlu0 %v844, 64
  %v847 = vpop.permute.xlu0 %846
  %v849 = vmul.f32 %v831, %v847
  %851 = vrot.lane.b32.xlu0 %v849, 32
  %v852 = vpop.permute.xlu0 %851
  %s854 = scalar_lea.vmem %s6, 32
  %855 = vst.msk [vmem:[%s854] sm:$0xff] %vm42, %v852
  %s856 = scalar_lea.vmem [#allocation2], 40
  %v857 = vld [vmem:[%s856] sm:$0xff]
  %v858 = vsel %vm42, %v852, 0
  %860 = vmatprep.subr.mxu0 0.0
  %861 = vmatpush1.msra.mxu0 %v328
  %862 = vmatprep.subr.mxu0 0.0
  %863 = vmatpush1.msra.mxu0 %v329
  %864 = vmatprep.subr.mxu0 0.0
  %865 = vmatpush1.msra.mxu0 %v330
  %866 = vmatprep.subr.mxu0 0.0
  %867 = vmatpush1.msra.mxu0 %v331
  %868 = vmatprep.subr.mxu0 0.0
  %869 = vmatpush1.msra.mxu0 0.0
  %870 = vmatprep.subr.mxu0 0.0
  %871 = vmatpush1.msra.mxu0 0.0
  %872 = vmatprep.subr.mxu0 0.0
  %873 = vmatpush1.msra.mxu0 0.0
  %874 = vmatprep.subr.mxu0 0.0
  %875 = vmatpush1.msra.mxu0 0.0
  %876 = vmatprep.subr.mxu0 0.0
  %877 = vmatpush1.msra.mxu0 0.0
  %878 = vmatprep.subr.mxu0 0.0
  %879 = vmatpush1.msra.mxu0 0.0
  %880 = vmatprep.subr.mxu0 0.0
  %881 = vmatpush1.msra.mxu0 0.0
  %882 = vmatprep.subr.mxu0 0.0
  %883 = vmatpush1.msra.mxu0 0.0
  %884 = vmatprep.subr.mxu0 0.0
  %885 = vmatpush1.msra.mxu0 0.0
  %886 = vmatprep.subr.mxu0 0.0
  %887 = vmatpush1.msra.mxu0 0.0
  %888 = vmatprep.subr.mxu0 0.0
  %889 = vmatpush1.msra.mxu0 0.0
  %890 = vmatprep.subr.mxu0 0.0
  %891 = vmatpush1.msra.mxu0 0.0
  %892 = vmatprep.subr.mxu0 0.0
  %893 = vmatpush1.msra.mxu0 0.0
  %894 = vmatprep.subr.mxu0 0.0
  %895 = vmatpush1.msra.mxu0 0.0
  %896 = vmatprep.subr.mxu0 0.0
  %897 = vmatpush1.msra.mxu0 0.0
  %898 = vmatprep.subr.mxu0 0.0
  %899 = vmatpush1.msra.mxu0 0.0
  %900 = vmatprep.subr.mxu0 0.0
  %901 = vmatpush1.msra.mxu0 0.0
  %902 = vmatprep.subr.mxu0 0.0
  %903 = vmatpush1.msra.mxu0 0.0
  %904 = vmatprep.subr.mxu0 0.0
  %905 = vmatpush1.msra.mxu0 0.0
  %906 = vmatprep.subr.mxu0 0.0
  %907 = vmatpush1.msra.mxu0 0.0
  %908 = vmatprep.subr.mxu0 0.0
  %909 = vmatpush1.msra.mxu0 0.0
  %910 = vmatprep.subr.mxu0 0.0
  %911 = vmatpush1.msra.mxu0 0.0
  %912 = vmatprep.subr.mxu0 0.0
  %913 = vmatpush1.msra.mxu0 0.0
  %914 = vmatprep.subr.mxu0 0.0
  %915 = vmatpush1.msra.mxu0 0.0
  %916 = vmatprep.subr.mxu0 0.0
  %917 = vmatpush1.msra.mxu0 0.0
  %918 = vmatprep.subr.mxu0 0.0
  %919 = vmatpush1.msra.mxu0 0.0
  %920 = vmatprep.subr.mxu0 0.0
  %921 = vmatpush1.msra.mxu0 0.0
  %922 = vmatprep.subr.mxu0 0.0
  %923 = vmatpush1.msra.mxu0 0.0
  %924 = vmatprep.mubr.f32.mxu0 0.0
  %925 = vmatmul.mubr.f32.gmra.mrb[0].mxu0 %v858
  %v926 = vpop.f32.mrb[0].mxu0
  %v927 = vadd.f32 0.0, %v926
  %v928 = vpop.f32.mrb[0].mxu0
  %929 = vdwg.mxu0
  %v930 = vadd.f32 %v857, %v927
  %v931 = vxor.u32 %v930, 2147483648
  %v932 = vmul.f32 %v931, 1.442695
  %v933 = vpow.pop %v932
  %v934 = vadd.f32 %v933, 1.0
  %v935 = vrcp.pop %v934
  %v936 = vmul.f32 1.0, %v935
  %v937 = vtanh.pop %v930
  %v938 = vmul.f32 %v936, %v843
  %940 = vrot.lane.b32.xlu0 %v937, 64
  %v941 = vpop.permute.xlu0 %940
  %v943 = vmul.f32 %v936, %v941
  %945 = vrot.lane.b32.xlu0 %v943, 32
  %v946 = vpop.permute.xlu0 %945
  %v948 = vadd.f32 %v938, %v946
  %v949 = vtanh.pop %v948
  %951 = vrot.lane.b32.xlu0 %v949, 64
  %v952 = vpop.permute.xlu0 %951
  %v954 = vmul.f32 %v936, %v952
  %956 = vrot.lane.b32.xlu0 %v954, 32
  %v957 = vpop.permute.xlu0 %956
  %s959 = scalar_lea.vmem %s6, 40
  %960 = vst.msk [vmem:[%s959] sm:$0xff] %vm42, %v957
  %s961 = scalar_lea.vmem [#allocation2], 48
  %v962 = vld [vmem:[%s961] sm:$0xff]
  %v963 = vsel %vm42, %v957, 0
  %965 = vmatprep.subr.mxu0 0.0
  %966 = vmatpush1.msra.mxu0 %v328
  %967 = vmatprep.subr.mxu0 0.0
  %968 = vmatpush1.msra.mxu0 %v329
  %969 = vmatprep.subr.mxu0 0.0
  %970 = vmatpush1.msra.mxu0 %v330
  %971 = vmatprep.subr.mxu0 0.0
  %972 = vmatpush1.msra.mxu0 %v331
  %973 = vmatprep.subr.mxu0 0.0
  %974 = vmatpush1.msra.mxu0 0.0
  %975 = vmatprep.subr.mxu0 0.0
  %976 = vmatpush1.msra.mxu0 0.0
  %977 = vmatprep.subr.mxu0 0.0
  %978 = vmatpush1.msra.mxu0 0.0
  %979 = vmatprep.subr.mxu0 0.0
  %980 = vmatpush1.msra.mxu0 0.0
  %981 = vmatprep.subr.mxu0 0.0
  %982 = vmatpush1.msra.mxu0 0.0
  %983 = vmatprep.subr.mxu0 0.0
  %984 = vmatpush1.msra.mxu0 0.0
  %985 = vmatprep.subr.mxu0 0.0
  %986 = vmatpush1.msra.mxu0 0.0
  %987 = vmatprep.subr.mxu0 0.0
  %988 = vmatpush1.msra.mxu0 0.0
  %989 = vmatprep.subr.mxu0 0.0
  %990 = vmatpush1.msra.mxu0 0.0
  %991 = vmatprep.subr.mxu0 0.0
  %992 = vmatpush1.msra.mxu0 0.0
  %993 = vmatprep.subr.mxu0 0.0
  %994 = vmatpush1.msra.mxu0 0.0
  %995 = vmatprep.subr.mxu0 0.0
  %996 = vmatpush1.msra.mxu0 0.0
  %997 = vmatprep.subr.mxu0 0.0
  %998 = vmatpush1.msra.mxu0 0.0
  %999 = vmatprep.subr.mxu0 0.0
  %1000 = vmatpush1.msra.mxu0 0.0
  %1001 = vmatprep.subr.mxu0 0.0
  %1002 = vmatpush1.msra.mxu0 0.0
  %1003 = vmatprep.subr.mxu0 0.0
  %1004 = vmatpush1.msra.mxu0 0.0
  %1005 = vmatprep.subr.mxu0 0.0
  %1006 = vmatpush1.msra.mxu0 0.0
  %1007 = vmatprep.subr.mxu0 0.0
  %1008 = vmatpush1.msra.mxu0 0.0
  %1009 = vmatprep.subr.mxu0 0.0
  %1010 = vmatpush1.msra.mxu0 0.0
  %1011 = vmatprep.subr.mxu0 0.0
  %1012 = vmatpush1.msra.mxu0 0.0
  %1013 = vmatprep.subr.mxu0 0.0
  %1014 = vmatpush1.msra.mxu0 0.0
  %1015 = vmatprep.subr.mxu0 0.0
  %1016 = vmatpush1.msra.mxu0 0.0
  %1017 = vmatprep.subr.mxu0 0.0
  %1018 = vmatpush1.msra.mxu0 0.0
  %1019 = vmatprep.subr.mxu0 0.0
  %1020 = vmatpush1.msra.mxu0 0.0
  %1021 = vmatprep.subr.mxu0 0.0
  %1022 = vmatpush1.msra.mxu0 0.0
  %1023 = vmatprep.subr.mxu0 0.0
  %1024 = vmatpush1.msra.mxu0 0.0
  %1025 = vmatprep.subr.mxu0 0.0
  %1026 = vmatpush1.msra.mxu0 0.0
  %1027 = vmatprep.subr.mxu0 0.0
  %1028 = vmatpush1.msra.mxu0 0.0
  %1029 = vmatprep.mubr.f32.mxu0 0.0
  %1030 = vmatmul.mubr.f32.gmra.mrb[0].mxu0 %v963
  %v1031 = vpop.f32.mrb[0].mxu0
  %v1032 = vadd.f32 0.0, %v1031
  %v1033 = vpop.f32.mrb[0].mxu0
  %1034 = vdwg.mxu0
  %v1035 = vadd.f32 %v962, %v1032
  %v1036 = vxor.u32 %v1035, 2147483648
  %v1037 = vmul.f32 %v1036, 1.442695
  %v1038 = vpow.pop %v1037
  %v1039 = vadd.f32 %v1038, 1.0
  %v1040 = vrcp.pop %v1039
  %v1041 = vmul.f32 1.0, %v1040
  %v1042 = vtanh.pop %v1035
  %v1043 = vmul.f32 %v1041, %v948
  %1045 = vrot.lane.b32.xlu0 %v1042, 64
  %v1046 = vpop.permute.xlu0 %1045
  %v1048 = vmul.f32 %v1041, %v1046
  %1050 = vrot.lane.b32.xlu0 %v1048, 32
  %v1051 = vpop.permute.xlu0 %1050
  %v1053 = vadd.f32 %v1043, %v1051
  %v1054 = vtanh.pop %v1053
  %1056 = vrot.lane.b32.xlu0 %v1054, 64
  %v1057 = vpop.permute.xlu0 %1056
  %v1059 = vmul.f32 %v1041, %v1057
  %1061 = vrot.lane.b32.xlu0 %v1059, 32
  %v1062 = vpop.permute.xlu0 %1061
  %s1064 = scalar_lea.vmem %s6, 48
  %1065 = vst.msk [vmem:[%s1064] sm:$0xff] %vm42, %v1062
  %s1066 = scalar_lea.vmem [#allocation2], 56
  %v1067 = vld [vmem:[%s1066] sm:$0xff]
  %v1068 = vsel %vm42, %v1062, 0
  %1070 = vmatprep.subr.mxu0 0.0
  %1071 = vmatpush1.msra.mxu0 %v328
  %1072 = vmatprep.subr.mxu0 0.0
  %1073 = vmatpush1.msra.mxu0 %v329
  %1074 = vmatprep.subr.mxu0 0.0
  %1075 = vmatpush1.msra.mxu0 %v330
  %1076 = vmatprep.subr.mxu0 0.0
  %1077 = vmatpush1.msra.mxu0 %v331
  %1078 = vmatprep.subr.mxu0 0.0
  %1079 = vmatpush1.msra.mxu0 0.0
  %1080 = vmatprep.subr.mxu0 0.0
  %1081 = vmatpush1.msra.mxu0 0.0
  %1082 = vmatprep.subr.mxu0 0.0
  %1083 = vmatpush1.msra.mxu0 0.0
  %1084 = vmatprep.subr.mxu0 0.0
  %1085 = vmatpush1.msra.mxu0 0.0
  %1086 = vmatprep.subr.mxu0 0.0
  %1087 = vmatpush1.msra.mxu0 0.0
  %1088 = vmatprep.subr.mxu0 0.0
  %1089 = vmatpush1.msra.mxu0 0.0
  %1090 = vmatprep.subr.mxu0 0.0
  %1091 = vmatpush1.msra.mxu0 0.0
  %1092 = vmatprep.subr.mxu0 0.0
  %1093 = vmatpush1.msra.mxu0 0.0
  %1094 = vmatprep.subr.mxu0 0.0
  %1095 = vmatpush1.msra.mxu0 0.0
  %1096 = vmatprep.subr.mxu0 0.0
  %1097 = vmatpush1.msra.mxu0 0.0
  %1098 = vmatprep.subr.mxu0 0.0
  %1099 = vmatpush1.msra.mxu0 0.0
  %1100 = vmatprep.subr.mxu0 0.0
  %1101 = vmatpush1.msra.mxu0 0.0
  %1102 = vmatprep.subr.mxu0 0.0
  %1103 = vmatpush1.msra.mxu0 0.0
  %1104 = vmatprep.subr.mxu0 0.0
  %1105 = vmatpush1.msra.mxu0 0.0
  %1106 = vmatprep.subr.mxu0 0.0
  %1107 = vmatpush1.msra.mxu0 0.0
  %1108 = vmatprep.subr.mxu0 0.0
  %1109 = vmatpush1.msra.mxu0 0.0
  %1110 = vmatprep.subr.mxu0 0.0
  %1111 = vmatpush1.msra.mxu0 0.0
  %1112 = vmatprep.subr.mxu0 0.0
  %1113 = vmatpush1.msra.mxu0 0.0
  %1114 = vmatprep.subr.mxu0 0.0
  %1115 = vmatpush1.msra.mxu0 0.0
  %1116 = vmatprep.subr.mxu0 0.0
  %1117 = vmatpush1.msra.mxu0 0.0
  %1118 = vmatprep.subr.mxu0 0.0
  %1119 = vmatpush1.msra.mxu0 0.0
  %1120 = vmatprep.subr.mxu0 0.0
  %1121 = vmatpush1.msra.mxu0 0.0
  %1122 = vmatprep.subr.mxu0 0.0
  %1123 = vmatpush1.msra.mxu0 0.0
  %1124 = vmatprep.subr.mxu0 0.0
  %1125 = vmatpush1.msra.mxu0 0.0
  %1126 = vmatprep.subr.mxu0 0.0
  %1127 = vmatpush1.msra.mxu0 0.0
  %1128 = vmatprep.subr.mxu0 0.0
  %1129 = vmatpush1.msra.mxu0 0.0
  %1130 = vmatprep.subr.mxu0 0.0
  %1131 = vmatpush1.msra.mxu0 0.0
  %1132 = vmatprep.subr.mxu0 0.0
  %1133 = vmatpush1.msra.mxu0 0.0
  %1134 = vmatprep.mubr.f32.mxu0 0.0
  %1135 = vmatmul.mubr.f32.gmra.mrb[0].mxu0 %v1068
  %v1136 = vpop.f32.mrb[0].mxu0
  %v1137 = vadd.f32 0.0, %v1136
  %v1138 = vpop.f32.mrb[0].mxu0
  %1139 = vdwg.mxu0
  %v1140 = vadd.f32 %v1067, %v1137
  %v1141 = vxor.u32 %v1140, 2147483648
  %v1142 = vmul.f32 %v1141, 1.442695
  %v1143 = vpow.pop %v1142
  %v1144 = vadd.f32 %v1143, 1.0
  %v1145 = vrcp.pop %v1144
  %v1146 = vmul.f32 1.0, %v1145
  %v1147 = vtanh.pop %v1140
  %v1148 = vmul.f32 %v1146, %v1053
  %1150 = vrot.lane.b32.xlu0 %v1147, 64
  %v1151 = vpop.permute.xlu0 %1150
  %v1153 = vmul.f32 %v1146, %v1151
  %1155 = vrot.lane.b32.xlu0 %v1153, 32
  %v1156 = vpop.permute.xlu0 %1155
  %v1158 = vadd.f32 %v1148, %v1156
  %v1159 = vtanh.pop %v1158
  %1161 = vrot.lane.b32.xlu0 %v1159, 64
  %v1162 = vpop.permute.xlu0 %1161
  %v1164 = vmul.f32 %v1146, %v1162
  %1166 = vrot.lane.b32.xlu0 %v1164, 32
  %v1167 = vpop.permute.xlu0 %1166
  %s1169 = scalar_lea.vmem %s6, 56
  %1170 = vst.msk [vmem:[%s1169] sm:$0xff] %vm42, %v1167
  // Predicated region
  $region26: #{oad_forward.1} parent=0 // pred_check
    _
  $region27: #{oad_forward.1} parent=0 // pred_check_branch
    %1172 = sbr.rel (0) target = $region29
  $region28: #{oad_forward.1} parent=0 // pred_region
    _
  $region29: #{oad_forward.1} parent=0 // pred_fallthru
    _
  // Predicated region
  $region30: #{oad_forward.1} parent=0 // pred_check
    _
  $region31: #{oad_forward.1} parent=0 // pred_check_branch
    %1174 = sbr.rel (0) target = $region33
  $region32: #{oad_forward.1} parent=0 // pred_region
    _
  $region33: #{oad_forward.1} parent=0 // pred_fallthru
    _

</llo_original>
